<compile_context>
chip_gen: v6e
topology: v6e:2x2x1
jax: 0.10.0
libtpu: 0.0.40
codegen_flags: <defaults>
</compile_context>

<pallas_src>
import jax
import jax.numpy as jnp
from jax.experimental import pallas as pl
from jax.experimental.pallas import tpu as pltpu

FEATURE_DIM  = 512    # feature_dim / hidden_dim default of ALIGN
TEXT_HIDDEN  = 128    # surrogate BERT hidden size (small)
IMG_CHANNELS = 4      # surrogate image channels (pooled NCHW -> (B, C))
REL_DIM      = 100    # self.dim
REL_COUNT    = 3      # self.relation_count
VOCAB        = 32     # surrogate tokenizer vocab
MARGIN       = 1.0    # MarginRankingLoss margin
EPS          = 1e-12  # F.normalize eps
VMEM_LIMIT   = 64 * 1024 * 1024


def _l2_normalize(y):
    # F.normalize(p=2, dim=1): x / max(||x||, eps)  ==  x * rsqrt(max(||x||^2, eps^2))
    n2 = jnp.sum(y * y, axis=1, keepdims=True)
    return y * jax.lax.rsqrt(jnp.maximum(n2, EPS * EPS))


# ------------------------- Pallas kernels -------------------------

def _image_encoder_kernel(x_ref, w1_ref, b1_ref, w2_ref, b2_ref, o_ref):
    # fused: backbone head linear -> hidden linear -> L2 normalize (VMEM-resident intermediate)
    x = x_ref[...].astype(jnp.bfloat16)
    h = jnp.dot(x, w1_ref[...], preferred_element_type=jnp.float32) + b1_ref[...]
    y = jnp.dot(h.astype(jnp.bfloat16), w2_ref[...],
                preferred_element_type=jnp.float32) + b2_ref[...]
    o_ref[...] = _l2_normalize(y).astype(o_ref.dtype)


def _text_encoder_kernel(x_ref, w_ref, b_ref, o_ref):
    # fused: text hidden linear -> L2 normalize
    x = x_ref[...].astype(jnp.bfloat16)
    y = jnp.dot(x, w_ref[...], preferred_element_type=jnp.float32) + b_ref[...]
    o_ref[...] = _l2_normalize(y).astype(o_ref.dtype)


def _clip_loss_kernel(img_ref, txt_ref, scale_ref, loss_ref,
                      m_sc, l_sc, diag_sc, col_sc):
    # column-tiled (flash-style) bidirectional cross-entropy on sims = img @ txt.T * scale
    j = pl.program_id(0)
    nj = pl.num_programs(0)

    @pl.when(j == 0)
    def _():
        m_sc[...] = jnp.full_like(m_sc, -jnp.inf)
        l_sc[...] = jnp.zeros_like(l_sc)
        diag_sc[...] = jnp.zeros_like(diag_sc)
        col_sc[...] = jnp.zeros_like(col_sc)

    img = img_ref[...].astype(jnp.bfloat16)      # (B, D)
    txt = txt_ref[...].astype(jnp.bfloat16)      # (TK, D)
    scale = scale_ref[0]
    s = jax.lax.dot_general(img, txt, (((1,), (1,)), ((), ())),
                            preferred_element_type=jnp.float32) * scale   # (B, TK)
    B, TK = s.shape
    row = jax.lax.broadcasted_iota(jnp.int32, (B, TK), 0)
    col = jax.lax.broadcasted_iota(jnp.int32, (B, TK), 1) + j * TK
    dmask = row == col

    # row-direction online logsumexp across column tiles
    m_new = jnp.maximum(m_sc[...], jnp.max(s, axis=1, keepdims=True))
    l_sc[...] = (jnp.exp(m_sc[...] - m_new) * l_sc[...]
                 + jnp.sum(jnp.exp(s - m_new), axis=1, keepdims=True))
    m_sc[...] = m_new
    diag_sc[...] = diag_sc[...] + jnp.sum(jnp.where(dmask, s, 0.0), axis=1, keepdims=True)

    # column-direction cross-entropy for this tile's columns (all rows resident)
    if B % 128 == 0 and TK % 128 == 0:
        # lane-aligned: one XLU transpose + lane-axis reductions
        st = s.T                                                        # (TK, B)
        maskT = (jax.lax.broadcasted_iota(jnp.int32, (TK, B), 0) + j * TK
                 == jax.lax.broadcasted_iota(jnp.int32, (TK, B), 1))
        m_c = jnp.max(st, axis=1, keepdims=True)
        lse_c = jnp.log(jnp.sum(jnp.exp(st - m_c), axis=1, keepdims=True)) + m_c
        diag_c = jnp.sum(jnp.where(maskT, st, 0.0), axis=1, keepdims=True)
        col_contrib = jnp.sum(lse_c - diag_c, axis=0, keepdims=True)    # (1, 1)
    else:
        m_c = jnp.max(s, axis=0, keepdims=True)                         # (1, TK)
        lse_c = jnp.log(jnp.sum(jnp.exp(s - m_c), axis=0, keepdims=True)) + m_c
        diag_c = jnp.sum(jnp.where(dmask, s, 0.0), axis=0, keepdims=True)
        col_contrib = jnp.sum(lse_c - diag_c, axis=1, keepdims=True)    # (1, 1)
    col_sc[...] = col_sc[...] + col_contrib

    @pl.when(j == nj - 1)
    def _():
        row_ce = m_sc[...] + jnp.log(l_sc[...]) - diag_sc[...]          # (B, 1)
        total = jnp.sum(row_ce, axis=0, keepdims=True) + col_sc[...]    # (1, 1)
        loss_ref[...] = total * (1.0 / (2.0 * B))


def _mkg_kernel(h_ref, re_ref, rw_ref, rb_ref, pt_ref, nt_ref, o_ref):
    # fused: relation linear -> L2 normalize everything -> TransE L1 distances -> margin loss
    rel = jnp.dot(re_ref[...].astype(jnp.bfloat16), rw_ref[...],
                  preferred_element_type=jnp.float32) + rb_ref[...]
    h = _l2_normalize(h_ref[...])
    r = _l2_normalize(rel)
    pt = _l2_normalize(pt_ref[...])
    nt = _l2_normalize(nt_ref[...])
    base = h + r
    pd = jnp.sum(jnp.abs(base - pt), axis=1, keepdims=True)   # (h+r-t).norm(p=1, dim=1)
    nd = jnp.sum(jnp.abs(base - nt), axis=1, keepdims=True)
    # MarginRankingLoss(margin=1, reduction='none'), target = -1:
    #   max(0, -(-1)*(pos - neg) + margin) = max(0, pos - neg + 1)
    loss = jnp.maximum(pd - nd + MARGIN, 0.0)
    # single (B, 3) output slab: one writeback DMA for the three quantities
    o_ref[:, 0:1] = pd
    o_ref[:, 1:2] = nd
    o_ref[:, 2:3] = loss


# ------------------------- pallas_call wrappers -------------------------

def image_encoder_fused(pooled, w1, b1, w2, b2):
    M, C = pooled.shape
    F_out = w2.shape[1]
    TM = M if M <= 256 else 256
    return pl.pallas_call(
        _image_encoder_kernel,
        out_shape=jax.ShapeDtypeStruct((M, F_out), jnp.float32),
        grid=(pl.cdiv(M, TM),),
        in_specs=[
            pl.BlockSpec((TM, C), lambda i: (i, 0)),
            pl.BlockSpec((C, F_out), lambda i: (0, 0)),
            pl.BlockSpec((1, F_out), lambda i: (0, 0)),
            pl.BlockSpec((F_out, F_out), lambda i: (0, 0)),
            pl.BlockSpec((1, F_out), lambda i: (0, 0)),
        ],
        out_specs=pl.BlockSpec((TM, F_out), lambda i: (i, 0)),
        compiler_params=pltpu.CompilerParams(
            dimension_semantics=("parallel",), vmem_limit_bytes=VMEM_LIMIT),
    )(pooled, w1, b1, w2, b2)


def text_encoder_fused(pooled, w, b):
    M, K = pooled.shape
    F_out = w.shape[1]
    TM = M if M <= 256 else 256
    return pl.pallas_call(
        _text_encoder_kernel,
        out_shape=jax.ShapeDtypeStruct((M, F_out), jnp.float32),
        grid=(pl.cdiv(M, TM),),
        in_specs=[
            pl.BlockSpec((TM, K), lambda i: (i, 0)),
            pl.BlockSpec((K, F_out), lambda i: (0, 0)),
            pl.BlockSpec((1, F_out), lambda i: (0, 0)),
        ],
        out_specs=pl.BlockSpec((TM, F_out), lambda i: (i, 0)),
        compiler_params=pltpu.CompilerParams(
            dimension_semantics=("parallel",), vmem_limit_bytes=VMEM_LIMIT),
    )(pooled, w, b)


def clip_loss(image_emb, text_emb, logit_scale):
    B, D = image_emb.shape
    TK = B if (B <= 1024 or B % 1024 != 0) else 1024   # column tile over the text batch
    out = pl.pallas_call(
        _clip_loss_kernel,
        out_shape=jax.ShapeDtypeStruct((1, 1), jnp.float32),
        grid=(pl.cdiv(B, TK),),
        in_specs=[
            pl.BlockSpec((B, D), lambda j: (0, 0)),
            pl.BlockSpec((TK, D), lambda j: (j, 0)),
            pl.BlockSpec(memory_space=pltpu.MemorySpace.SMEM),
        ],
        out_specs=pl.BlockSpec((1, 1), lambda j: (0, 0)),
        scratch_shapes=[
            pltpu.VMEM((B, 1), jnp.float32),   # running row max
            pltpu.VMEM((B, 1), jnp.float32),   # running row exp-sum
            pltpu.VMEM((B, 1), jnp.float32),   # diagonal accumulator
            pltpu.VMEM((1, 1), jnp.float32),   # column-CE accumulator
        ],
        compiler_params=pltpu.CompilerParams(
            dimension_semantics=("arbitrary",), vmem_limit_bytes=VMEM_LIMIT),
    )(image_emb, text_emb, jnp.reshape(logit_scale, (1,)).astype(jnp.float32))
    return out[0, 0]


def mkg_distance_and_loss(head, rel_emb, rel_w, rel_b, pos_tail, neg_tail):
    B, D = head.shape
    RD = rel_emb.shape[1]
    out = pl.pallas_call(
        _mkg_kernel,
        out_shape=jax.ShapeDtypeStruct((B, 3), jnp.float32),
        grid=(1,),
        in_specs=[
            pl.BlockSpec((B, D), lambda i: (0, 0)),
            pl.BlockSpec((B, RD), lambda i: (0, 0)),
            pl.BlockSpec((RD, D), lambda i: (0, 0)),
            pl.BlockSpec((1, D), lambda i: (0, 0)),
            pl.BlockSpec((B, D), lambda i: (0, 0)),
            pl.BlockSpec((B, D), lambda i: (0, 0)),
        ],
        out_specs=pl.BlockSpec((B, 3), lambda i: (0, 0)),
        compiler_params=pltpu.CompilerParams(
            dimension_semantics=("arbitrary",), vmem_limit_bytes=VMEM_LIMIT),
    )(head, rel_emb, rel_w, rel_b, pos_tail, neg_tail)
    return out[:, 0], out[:, 1], out[:, 2]


# ------------------------- parameters -------------------------

def init_params(key):
    ks = jax.random.split(key, 8)

    def lin(k, out_f, in_f):
        # torch nn.Linear init; stored pre-transposed (in, out) in bf16, bias (1, out) f32
        k1, k2 = jax.random.split(k)
        lim = 1.0 / jnp.sqrt(in_f)
        w = jax.random.uniform(k1, (out_f, in_f), jnp.float32, -lim, lim)
        b = jax.random.uniform(k2, (out_f,), jnp.float32, -lim, lim)
        return w.T.astype(jnp.bfloat16), b.reshape(1, out_f)

    params = {}
    # TODO(synk): surrogate for EfficientNet backbone (global-avg-pool -> linear head)
    params['img_w1'], params['img_b1'] = lin(ks[0], FEATURE_DIM, IMG_CHANNELS)
    # TODO(synk): surrogate for BERT (token embedding table, masked-mean pooled)
    params['tok_emb'] = jax.random.normal(ks[1], (VOCAB, TEXT_HIDDEN), jnp.float32) * 0.02
    params['img_w2'], params['img_b2'] = lin(ks[2], FEATURE_DIM, FEATURE_DIM)   # image_hidden_layer
    params['txt_w'], params['txt_b'] = lin(ks[3], FEATURE_DIM, TEXT_HIDDEN)     # text_hidden_layer
    params['logit_scale'] = jnp.array(1.0, jnp.float32)

    # _init_relation_emb: uniform(-6/sqrt(dim), 6/sqrt(dim)); rows :-1 divided by L1 norm
    rng_u = 6.0 / jnp.sqrt(jnp.float32(REL_DIM))
    rel = jax.random.uniform(ks[4], (REL_COUNT + 1, REL_DIM), jnp.float32, -rng_u, rng_u)
    l1 = jnp.sum(jnp.abs(rel[:-1]), axis=1, keepdims=True)
    rel = rel.at[:-1].set(rel[:-1] / l1)
    params['relations_emb'] = rel
    params['rel_w'], params['rel_b'] = lin(ks[5], 512, REL_DIM)                 # linear_relation
    return params


# ------------------------- surrogate pooling (plain JAX) -------------------------

def _pool_image(image):
    # TODO(synk): full EfficientNet replaced by NCHW global-average-pool
    return jnp.mean(image.astype(jnp.float32), axis=(2, 3))


def _pool_text(params, text):
    # TODO(synk): full BERT replaced by masked-mean pooled token embeddings (stands in for CLS)
    ids = text['input_ids']
    mask = text['attention_mask'].astype(jnp.float32)
    emb = jnp.take(params['tok_emb'], ids, axis=0)
    return jnp.sum(emb * mask[..., None], axis=1) / jnp.maximum(
        jnp.sum(mask, axis=1, keepdims=True), 1.0)


# ------------------------- ALIGN.forward -------------------------

def align_forward(params, image, text, mkg_pos_text_head, mkg_pos_relation,
                  mkg_pos_text_tail, mkg_pos_img_tail, mkg_pos_tail_type,
                  mkg_neg_text_tail, mkg_neg_img_tail):
    batch_size = image.shape[0]

    # All 3 image encodes share one fused pallas_call (3B rows).
    img_pooled = jnp.concatenate([_pool_image(image),
                                  _pool_image(mkg_pos_img_tail),
                                  _pool_image(mkg_neg_img_tail)], axis=0)
    img_enc = image_encoder_fused(img_pooled, params['img_w1'], params['img_b1'],
                                  params['img_w2'], params['img_b2'])
    image_embeddings, pos_tail_img, neg_tail_img = jnp.split(img_enc, 3, axis=0)

    # All 4 text encodes share one fused pallas_call (4B rows).
    txt_pooled = jnp.concatenate([_pool_text(params, text),
                                  _pool_text(params, mkg_pos_text_head),
                                  _pool_text(params, mkg_pos_text_tail),
                                  _pool_text(params, mkg_neg_text_tail)], axis=0)
    txt_enc = text_encoder_fused(txt_pooled, params['txt_w'], params['txt_b'])
    text_embeddings, head, pos_tail_name, neg_tail_name = jnp.split(txt_enc, 4, axis=0)

    # sims = img @ txt.T * logit_scale ; loss = (CE(sims) + CE(sims.T)) / 2  (raw scale, as in spec)
    loss_clip = clip_loss(image_embeddings, text_embeddings, params['logit_scale'])

    # relation embedding lookup; its linear is fused inside the MKG kernel
    rel_e = jnp.take(params['relations_emb'], mkg_pos_relation, axis=0)     # (B, REL_DIM)

    tail_type = jnp.reshape(mkg_pos_tail_type, (-1,)) - 1                   # mkg_pos_tail_type -= 1
    # original code indexes concats[type, arange, :]; intended semantics: per-sample select
    # the text tail (type 0) or the image tail (type 1) from cat([name, img], dim=0).
    sel = tail_type * batch_size + jnp.arange(batch_size, dtype=tail_type.dtype)
    pos_tail = jnp.take(jnp.concatenate([pos_tail_name, pos_tail_img], axis=0), sel, axis=0)
    neg_tail = jnp.take(jnp.concatenate([neg_tail_name, neg_tail_img], axis=0), sel, axis=0)

    pos_distance, neg_distance, mkg_loss = mkg_distance_and_loss(
        head, rel_e, params['rel_w'], params['rel_b'], pos_tail, neg_tail)
    return loss_clip, mkg_loss, pos_distance, neg_distance


# ------------------------- main -------------------------

if __name__ == "__main__":
    key = jax.random.PRNGKey(0)
    pkey, dkey = jax.random.split(key)
    params = init_params(pkey)

    B, C, HW, S = 2, IMG_CHANNELS, 16, 8
    ks = jax.random.split(dkey, 10)

    def make_text(k):
        return {'input_ids': jax.random.randint(k, (B, S), 0, VOCAB, dtype=jnp.int32),
                'attention_mask': jnp.ones((B, S), jnp.int32)}

    image = jax.random.normal(ks[0], (B, C, HW, HW), jnp.float32)
    text = make_text(ks[1])
    mkg_pos_text_head = make_text(ks[2])
    mkg_pos_relation = jax.random.randint(ks[3], (B,), 0, REL_COUNT, dtype=jnp.int32)
    mkg_pos_text_tail = make_text(ks[4])
    mkg_pos_img_tail = jax.random.normal(ks[5], (B, C, HW, HW), jnp.float32)
    mkg_pos_tail_type = jax.random.randint(ks[6], (B, 1), 1, 3, dtype=jnp.int32)  # {1, 2}
    mkg_neg_text_tail = make_text(ks[7])
    mkg_neg_img_tail = jax.random.normal(ks[8], (B, C, HW, HW), jnp.float32)

    fwd = jax.jit(align_forward)
    out = fwd(params, image, text, mkg_pos_text_head, mkg_pos_relation,
              mkg_pos_text_tail, mkg_pos_img_tail, mkg_pos_tail_type,
              mkg_neg_text_tail, mkg_neg_img_tail)
    jax.block_until_ready(out)
    print("KERNEL_OK")
</pallas_src>

<mosaic_0001>
module attributes {stable_mosaic.version = 11 : i64} {
  func.func @_text_encoder_kernel(%arg0: i32, %arg1: memref<8x128xf32, #tpu.memory_space<vmem>>, %arg2: memref<128x512xbf16, #tpu.memory_space<vmem>>, %arg3: memref<1x512xf32, #tpu.memory_space<vmem>>, %arg4: memref<8x512xf32, #tpu.memory_space<vmem>>) attributes {dimension_semantics = [#tpu.dimension_semantics<parallel>], iteration_bounds = array<i64: 1>, scalar_prefetch = 0 : i64, scratch_operands = 0 : i64, tpu.core_type = #tpu.core_type<tc>, window_params = [{transform_indices = @transform_0, window_bounds = array<i64: 8, 128>}, {pipeline_mode = #tpu.pipeline_mode<synchronous>, transform_indices = @transform_1, window_bounds = array<i64: 128, 512>}, {pipeline_mode = #tpu.pipeline_mode<synchronous>, transform_indices = @transform_2, window_bounds = array<i64: 1, 512>}, {transform_indices = @transform_3, window_bounds = array<i64: 8, 512>}]} {
    %c0 = arith.constant 0 : index
    %c0_0 = arith.constant 0 : index
    %0 = vector.load %arg1[%c0, %c0_0] : memref<8x128xf32, #tpu.memory_space<vmem>>, vector<8x128xf32>
    %1 = arith.truncf %0 : vector<8x128xf32> to vector<8x128xbf16>
    %c0_1 = arith.constant 0 : index
    %c0_2 = arith.constant 0 : index
    %2 = vector.load %arg2[%c0_1, %c0_2] : memref<128x512xbf16, #tpu.memory_space<vmem>>, vector<128x512xbf16>
    %cst = arith.constant dense<0.000000e+00> : vector<8x512xf32>
    %3 = tpu.matmul %1, %2, %cst {dimension_numbers = #tpu.dot_dimension_numbers<[1], [0], [0], [1], [0, 0, 1, 1], [], []>} : vector<8x128xbf16>, vector<128x512xbf16>, vector<8x512xf32> -> vector<8x512xf32>
    %c0_3 = arith.constant 0 : index
    %c0_4 = arith.constant 0 : index
    %4 = vector.load %arg3[%c0_3, %c0_4] : memref<1x512xf32, #tpu.memory_space<vmem>>, vector<1x512xf32>
    %5 = vector.broadcast %4 : vector<1x512xf32> to vector<8x512xf32>
    %6 = arith.addf %3, %5 : vector<8x512xf32>
    %7 = arith.mulf %6, %6 : vector<8x512xf32>
    %cst_5 = arith.constant dense<0.000000e+00> : vector<8xf32>
    %8 = vector.multi_reduction <add>, %7, %cst_5 [1] : vector<8x512xf32> to vector<8xf32>
    %9 = vector.shape_cast %8 : vector<8xf32> to vector<8x1xf32>
    %cst_6 = arith.constant 1.000000e-24 : f32
    %10 = vector.broadcast %cst_6 : f32 to vector<8x1xf32>
    %11 = arith.maximumf %9, %10 : vector<8x1xf32>
    %12 = math.rsqrt %11 : vector<8x1xf32>
    %13 = vector.broadcast %12 : vector<8x1xf32> to vector<8x512xf32>
    %14 = arith.mulf %6, %13 : vector<8x512xf32>
    %c0_7 = arith.constant 0 : index
    %c0_8 = arith.constant 0 : index
    %15 = vector.load %arg4[%c0_7, %c0_8] : memref<8x512xf32, #tpu.memory_space<vmem>>, vector<8x512xf32>
    tpu.vector_store %arg4[%c0_7, %c0_8], %14 {strides = array<i32>} : memref<8x512xf32, #tpu.memory_space<vmem>>, vector<8x512xf32>,
    return
  }
  func.func @transform_0(%arg0: i32) -> (i32, i32) {
    %c0_i32 = arith.constant 0 : i32
    %c0_i32_0 = arith.constant 0 : i32
    return %arg0, %c0_i32 : i32, i32
  }
  func.func @transform_1(%arg0: i32) -> (i32, i32) {
    %c0_i32 = arith.constant 0 : i32
    %c0_i32_0 = arith.constant 0 : i32
    %c0_i32_1 = arith.constant 0 : i32
    return %c0_i32, %c0_i32_0 : i32, i32
  }
  func.func @transform_2(%arg0: i32) -> (i32, i32) {
    %c0_i32 = arith.constant 0 : i32
    %c0_i32_0 = arith.constant 0 : i32
    %c0_i32_1 = arith.constant 0 : i32
    return %c0_i32, %c0_i32_0 : i32, i32
  }
  func.func @transform_3(%arg0: i32) -> (i32, i32) {
    %c0_i32 = arith.constant 0 : i32
    %c0_i32_0 = arith.constant 0 : i32
    return %arg0, %c0_i32 : i32, i32
  }
}

module attributes {stable_mosaic.version = 11 : i64} {
  func.func @_image_encoder_kernel(%arg0: i32, %arg1: memref<6x4xf32, #tpu.memory_space<vmem>>, %arg2: memref<4x512xbf16, #tpu.memory_space<vmem>>, %arg3: memref<1x512xf32, #tpu.memory_space<vmem>>, %arg4: memref<512x512xbf16, #tpu.memory_space<vmem>>, %arg5: memref<1x512xf32, #tpu.memory_space<vmem>>, %arg6: memref<6x512xf32, #tpu.memory_space<vmem>>) attributes {dimension_semantics = [#tpu.dimension_semantics<parallel>], iteration_bounds = array<i64: 1>, scalar_prefetch = 0 : i64, scratch_operands = 0 : i64, tpu.core_type = #tpu.core_type<tc>, window_params = [{transform_indices = @transform_0, window_bounds = array<i64: 6, 4>}, {pipeline_mode = #tpu.pipeline_mode<synchronous>, transform_indices = @transform_1, window_bounds = array<i64: 4, 512>}, {pipeline_mode = #tpu.pipeline_mode<synchronous>, transform_indices = @transform_2, window_bounds = array<i64: 1, 512>}, {pipeline_mode = #tpu.pipeline_mode<synchronous>, transform_indices = @transform_3, window_bounds = array<i64: 512, 512>}, {pipeline_mode = #tpu.pipeline_mode<synchronous>, transform_indices = @transform_4, window_bounds = array<i64: 1, 512>}, {transform_indices = @transform_5, window_bounds = array<i64: 6, 512>}]} {
    %c0 = arith.constant 0 : index
    %c0_0 = arith.constant 0 : index
    %0 = vector.load %arg1[%c0, %c0_0] : memref<6x4xf32, #tpu.memory_space<vmem>>, vector<6x4xf32>
    %1 = arith.truncf %0 : vector<6x4xf32> to vector<6x4xbf16>
    %c0_1 = arith.constant 0 : index
    %c0_2 = arith.constant 0 : index
    %2 = vector.load %arg2[%c0_1, %c0_2] : memref<4x512xbf16, #tpu.memory_space<vmem>>, vector<4x512xbf16>
    %cst = arith.constant dense<0.000000e+00> : vector<6x512xf32>
    %3 = tpu.matmul %1, %2, %cst {dimension_numbers = #tpu.dot_dimension_numbers<[1], [0], [0], [1], [0, 0, 1, 1], [], []>} : vector<6x4xbf16>, vector<4x512xbf16>, vector<6x512xf32> -> vector<6x512xf32>
    %c0_3 = arith.constant 0 : index
    %c0_4 = arith.constant 0 : index
    %4 = vector.load %arg3[%c0_3, %c0_4] : memref<1x512xf32, #tpu.memory_space<vmem>>, vector<1x512xf32>
    %5 = vector.broadcast %4 : vector<1x512xf32> to vector<6x512xf32>
    %6 = arith.addf %3, %5 : vector<6x512xf32>
    %7 = arith.truncf %6 : vector<6x512xf32> to vector<6x512xbf16>
    %c0_5 = arith.constant 0 : index
    %c0_6 = arith.constant 0 : index
    %8 = vector.load %arg4[%c0_5, %c0_6] : memref<512x512xbf16, #tpu.memory_space<vmem>>, vector<512x512xbf16>
    %cst_7 = arith.constant dense<0.000000e+00> : vector<6x512xf32>
    %9 = tpu.matmul %7, %8, %cst_7 {dimension_numbers = #tpu.dot_dimension_numbers<[1], [0], [0], [1], [0, 0, 1, 1], [], []>} : vector<6x512xbf16>, vector<512x512xbf16>, vector<6x512xf32> -> vector<6x512xf32>
    %c0_8 = arith.constant 0 : index
    %c0_9 = arith.constant 0 : index
    %10 = vector.load %arg5[%c0_8, %c0_9] : memref<1x512xf32, #tpu.memory_space<vmem>>, vector<1x512xf32>
    %11 = vector.broadcast %10 : vector<1x512xf32> to vector<6x512xf32>
    %12 = arith.addf %9, %11 : vector<6x512xf32>
    %13 = arith.mulf %12, %12 : vector<6x512xf32>
    %cst_10 = arith.constant dense<0.000000e+00> : vector<6xf32>
    %14 = vector.multi_reduction <add>, %13, %cst_10 [1] : vector<6x512xf32> to vector<6xf32>
    %15 = vector.shape_cast %14 : vector<6xf32> to vector<6x1xf32>
    %cst_11 = arith.constant 1.000000e-24 : f32
    %16 = vector.broadcast %cst_11 : f32 to vector<6x1xf32>
    %17 = arith.maximumf %15, %16 : vector<6x1xf32>
    %18 = math.rsqrt %17 : vector<6x1xf32>
    %19 = vector.broadcast %18 : vector<6x1xf32> to vector<6x512xf32>
    %20 = arith.mulf %12, %19 : vector<6x512xf32>
    %c0_12 = arith.constant 0 : index
    %c0_13 = arith.constant 0 : index
    %21 = vector.load %arg6[%c0_12, %c0_13] : memref<6x512xf32, #tpu.memory_space<vmem>>, vector<6x512xf32>
    tpu.vector_store %arg6[%c0_12, %c0_13], %20 {strides = array<i32>} : memref<6x512xf32, #tpu.memory_space<vmem>>, vector<6x512xf32>,
    return
  }
  func.func @transform_0(%arg0: i32) -> (i32, i32) {
    %c0_i32 = arith.constant 0 : i32
    %c0_i32_0 = arith.constant 0 : i32
    return %arg0, %c0_i32 : i32, i32
  }
  func.func @transform_1(%arg0: i32) -> (i32, i32) {
    %c0_i32 = arith.constant 0 : i32
    %c0_i32_0 = arith.constant 0 : i32
    %c0_i32_1 = arith.constant 0 : i32
    return %c0_i32, %c0_i32_0 : i32, i32
  }
  func.func @transform_2(%arg0: i32) -> (i32, i32) {
    %c0_i32 = arith.constant 0 : i32
    %c0_i32_0 = arith.constant 0 : i32
    %c0_i32_1 = arith.constant 0 : i32
    return %c0_i32, %c0_i32_0 : i32, i32
  }
  func.func @transform_3(%arg0: i32) -> (i32, i32) {
    %c0_i32 = arith.constant 0 : i32
    %c0_i32_0 = arith.constant 0 : i32
    %c0_i32_1 = arith.constant 0 : i32
    return %c0_i32, %c0_i32_0 : i32, i32
  }
  func.func @transform_4(%arg0: i32) -> (i32, i32) {
    %c0_i32 = arith.constant 0 : i32
    %c0_i32_0 = arith.constant 0 : i32
    %c0_i32_1 = arith.constant 0 : i32
    return %c0_i32, %c0_i32_0 : i32, i32
  }
  func.func @transform_5(%arg0: i32) -> (i32, i32) {
    %c0_i32 = arith.constant 0 : i32
    %c0_i32_0 = arith.constant 0 : i32
    return %arg0, %c0_i32 : i32, i32
  }
}

module attributes {stable_mosaic.version = 11 : i64} {
  func.func @_mkg_kernel(%arg0: i32, %arg1: memref<2x512xf32, #tpu.memory_space<vmem>>, %arg2: memref<2x100xf32, #tpu.memory_space<vmem>>, %arg3: memref<100x512xbf16, #tpu.memory_space<vmem>>, %arg4: memref<1x512xf32, #tpu.memory_space<vmem>>, %arg5: memref<2x512xf32, #tpu.memory_space<vmem>>, %arg6: memref<2x512xf32, #tpu.memory_space<vmem>>, %arg7: memref<2x3xf32, #tpu.memory_space<vmem>>) attributes {dimension_semantics = [#tpu.dimension_semantics<arbitrary>], iteration_bounds = array<i64: 1>, scalar_prefetch = 0 : i64, scratch_operands = 0 : i64, tpu.core_type = #tpu.core_type<tc>, window_params = [{pipeline_mode = #tpu.pipeline_mode<synchronous>, transform_indices = @transform_0, window_bounds = array<i64: 2, 512>}, {pipeline_mode = #tpu.pipeline_mode<synchronous>, transform_indices = @transform_1, window_bounds = array<i64: 2, 100>}, {pipeline_mode = #tpu.pipeline_mode<synchronous>, transform_indices = @transform_2, window_bounds = array<i64: 100, 512>}, {pipeline_mode = #tpu.pipeline_mode<synchronous>, transform_indices = @transform_3, window_bounds = array<i64: 1, 512>}, {pipeline_mode = #tpu.pipeline_mode<synchronous>, transform_indices = @transform_4, window_bounds = array<i64: 2, 512>}, {pipeline_mode = #tpu.pipeline_mode<synchronous>, transform_indices = @transform_5, window_bounds = array<i64: 2, 512>}, {pipeline_mode = #tpu.pipeline_mode<synchronous>, transform_indices = @transform_6, window_bounds = array<i64: 2, 3>}]} {
    %c0 = arith.constant 0 : index
    %c0_0 = arith.constant 0 : index
    %0 = vector.load %arg2[%c0, %c0_0] : memref<2x100xf32, #tpu.memory_space<vmem>>, vector<2x100xf32>
    %1 = arith.truncf %0 : vector<2x100xf32> to vector<2x100xbf16>
    %c0_1 = arith.constant 0 : index
    %c0_2 = arith.constant 0 : index
    %2 = vector.load %arg3[%c0_1, %c0_2] : memref<100x512xbf16, #tpu.memory_space<vmem>>, vector<100x512xbf16>
    %cst = arith.constant dense<0.000000e+00> : vector<2x512xf32>
    %3 = tpu.matmul %1, %2, %cst {dimension_numbers = #tpu.dot_dimension_numbers<[1], [0], [0], [1], [0, 0, 1, 1], [], []>} : vector<2x100xbf16>, vector<100x512xbf16>, vector<2x512xf32> -> vector<2x512xf32>
    %c0_3 = arith.constant 0 : index
    %c0_4 = arith.constant 0 : index
    %4 = vector.load %arg4[%c0_3, %c0_4] : memref<1x512xf32, #tpu.memory_space<vmem>>, vector<1x512xf32>
    %5 = vector.broadcast %4 : vector<1x512xf32> to vector<2x512xf32>
    %6 = arith.addf %3, %5 : vector<2x512xf32>
    %c0_5 = arith.constant 0 : index
    %c0_6 = arith.constant 0 : index
    %7 = vector.load %arg1[%c0_5, %c0_6] : memref<2x512xf32, #tpu.memory_space<vmem>>, vector<2x512xf32>
    %8 = arith.mulf %7, %7 : vector<2x512xf32>
    %cst_7 = arith.constant dense<0.000000e+00> : vector<2xf32>
    %9 = vector.multi_reduction <add>, %8, %cst_7 [1] : vector<2x512xf32> to vector<2xf32>
    %10 = vector.shape_cast %9 : vector<2xf32> to vector<2x1xf32>
    %cst_8 = arith.constant 1.000000e-24 : f32
    %11 = vector.broadcast %cst_8 : f32 to vector<2x1xf32>
    %12 = arith.maximumf %10, %11 : vector<2x1xf32>
    %13 = math.rsqrt %12 : vector<2x1xf32>
    %14 = vector.broadcast %13 : vector<2x1xf32> to vector<2x512xf32>
    %15 = arith.mulf %7, %14 : vector<2x512xf32>
    %16 = arith.mulf %6, %6 : vector<2x512xf32>
    %cst_9 = arith.constant dense<0.000000e+00> : vector<2xf32>
    %17 = vector.multi_reduction <add>, %16, %cst_9 [1] : vector<2x512xf32> to vector<2xf32>
    %18 = vector.shape_cast %17 : vector<2xf32> to vector<2x1xf32>
    %cst_10 = arith.constant 1.000000e-24 : f32
    %19 = vector.broadcast %cst_10 : f32 to vector<2x1xf32>
    %20 = arith.maximumf %18, %19 : vector<2x1xf32>
    %21 = math.rsqrt %20 : vector<2x1xf32>
    %22 = vector.broadcast %21 : vector<2x1xf32> to vector<2x512xf32>
    %23 = arith.mulf %6, %22 : vector<2x512xf32>
    %c0_11 = arith.constant 0 : index
    %c0_12 = arith.constant 0 : index
    %24 = vector.load %arg5[%c0_11, %c0_12] : memref<2x512xf32, #tpu.memory_space<vmem>>, vector<2x512xf32>
    %25 = arith.mulf %24, %24 : vector<2x512xf32>
    %cst_13 = arith.constant dense<0.000000e+00> : vector<2xf32>
    %26 = vector.multi_reduction <add>, %25, %cst_13 [1] : vector<2x512xf32> to vector<2xf32>
    %27 = vector.shape_cast %26 : vector<2xf32> to vector<2x1xf32>
    %cst_14 = arith.constant 1.000000e-24 : f32
    %28 = vector.broadcast %cst_14 : f32 to vector<2x1xf32>
    %29 = arith.maximumf %27, %28 : vector<2x1xf32>
    %30 = math.rsqrt %29 : vector<2x1xf32>
    %31 = vector.broadcast %30 : vector<2x1xf32> to vector<2x512xf32>
    %32 = arith.mulf %24, %31 : vector<2x512xf32>
    %c0_15 = arith.constant 0 : index
    %c0_16 = arith.constant 0 : index
    %33 = vector.load %arg6[%c0_15, %c0_16] : memref<2x512xf32, #tpu.memory_space<vmem>>, vector<2x512xf32>
    %34 = arith.mulf %33, %33 : vector<2x512xf32>
    %cst_17 = arith.constant dense<0.000000e+00> : vector<2xf32>
    %35 = vector.multi_reduction <add>, %34, %cst_17 [1] : vector<2x512xf32> to vector<2xf32>
    %36 = vector.shape_cast %35 : vector<2xf32> to vector<2x1xf32>
    %cst_18 = arith.constant 1.000000e-24 : f32
    %37 = vector.broadcast %cst_18 : f32 to vector<2x1xf32>
    %38 = arith.maximumf %36, %37 : vector<2x1xf32>
    %39 = math.rsqrt %38 : vector<2x1xf32>
    %40 = vector.broadcast %39 : vector<2x1xf32> to vector<2x512xf32>
    %41 = arith.mulf %33, %40 : vector<2x512xf32>
    %42 = arith.addf %15, %23 : vector<2x512xf32>
    %43 = arith.subf %42, %32 : vector<2x512xf32>
    %44 = math.absf %43 : vector<2x512xf32>
    %cst_19 = arith.constant dense<0.000000e+00> : vector<2xf32>
    %45 = vector.multi_reduction <add>, %44, %cst_19 [1] : vector<2x512xf32> to vector<2xf32>
    %46 = vector.shape_cast %45 : vector<2xf32> to vector<2x1xf32>
    %47 = arith.subf %42, %41 : vector<2x512xf32>
    %48 = math.absf %47 : vector<2x512xf32>
    %cst_20 = arith.constant dense<0.000000e+00> : vector<2xf32>
    %49 = vector.multi_reduction <add>, %48, %cst_20 [1] : vector<2x512xf32> to vector<2xf32>
    %50 = vector.shape_cast %49 : vector<2xf32> to vector<2x1xf32>
    %51 = arith.subf %46, %50 : vector<2x1xf32>
    %cst_21 = arith.constant 1.000000e+00 : f32
    %52 = vector.broadcast %cst_21 : f32 to vector<2x1xf32>
    %53 = arith.addf %51, %52 : vector<2x1xf32>
    %cst_22 = arith.constant 0.000000e+00 : f32
    %54 = vector.broadcast %cst_22 : f32 to vector<2x1xf32>
    %55 = arith.maximumf %53, %54 : vector<2x1xf32>
    %c0_23 = arith.constant 0 : index
    %c0_24 = arith.constant 0 : index
    %56 = vector.load %arg7[%c0_23, %c0_24] : memref<2x3xf32, #tpu.memory_space<vmem>>, vector<2x1xf32>
    tpu.vector_store %arg7[%c0_23, %c0_24], %46 {strides = array<i32>} : memref<2x3xf32, #tpu.memory_space<vmem>>, vector<2x1xf32>,
    %c0_25 = arith.constant 0 : index
    %c1 = arith.constant 1 : index
    %57 = vector.load %arg7[%c0_25, %c1] : memref<2x3xf32, #tpu.memory_space<vmem>>, vector<2x1xf32>
    tpu.vector_store %arg7[%c0_25, %c1], %50 {strides = array<i32>} : memref<2x3xf32, #tpu.memory_space<vmem>>, vector<2x1xf32>,
    %c0_26 = arith.constant 0 : index
    %c2 = arith.constant 2 : index
    %58 = vector.load %arg7[%c0_26, %c2] : memref<2x3xf32, #tpu.memory_space<vmem>>, vector<2x1xf32>
    tpu.vector_store %arg7[%c0_26, %c2], %55 {strides = array<i32>} : memref<2x3xf32, #tpu.memory_space<vmem>>, vector<2x1xf32>,
    return
  }
  func.func @transform_0(%arg0: i32) -> (i32, i32) {
    %c0_i32 = arith.constant 0 : i32
    %c0_i32_0 = arith.constant 0 : i32
    %c0_i32_1 = arith.constant 0 : i32
    return %c0_i32, %c0_i32_0 : i32, i32
  }
  func.func @transform_1(%arg0: i32) -> (i32, i32) {
    %c0_i32 = arith.constant 0 : i32
    %c0_i32_0 = arith.constant 0 : i32
    %c0_i32_1 = arith.constant 0 : i32
    return %c0_i32, %c0_i32_0 : i32, i32
  }
  func.func @transform_2(%arg0: i32) -> (i32, i32) {
    %c0_i32 = arith.constant 0 : i32
    %c0_i32_0 = arith.constant 0 : i32
    %c0_i32_1 = arith.constant 0 : i32
    return %c0_i32, %c0_i32_0 : i32, i32
  }
  func.func @transform_3(%arg0: i32) -> (i32, i32) {
    %c0_i32 = arith.constant 0 : i32
    %c0_i32_0 = arith.constant 0 : i32
    %c0_i32_1 = arith.constant 0 : i32
    return %c0_i32, %c0_i32_0 : i32, i32
  }
  func.func @transform_4(%arg0: i32) -> (i32, i32) {
    %c0_i32 = arith.constant 0 : i32
    %c0_i32_0 = arith.constant 0 : i32
    %c0_i32_1 = arith.constant 0 : i32
    return %c0_i32, %c0_i32_0 : i32, i32
  }
  func.func @transform_5(%arg0: i32) -> (i32, i32) {
    %c0_i32 = arith.constant 0 : i32
    %c0_i32_0 = arith.constant 0 : i32
    %c0_i32_1 = arith.constant 0 : i32
    return %c0_i32, %c0_i32_0 : i32, i32
  }
  func.func @transform_6(%arg0: i32) -> (i32, i32) {
    %c0_i32 = arith.constant 0 : i32
    %c0_i32_0 = arith.constant 0 : i32
    %c0_i32_1 = arith.constant 0 : i32
    return %c0_i32, %c0_i32_0 : i32, i32
  }
}

module attributes {stable_mosaic.version = 11 : i64} {
  func.func @_clip_loss_kernel(%arg0: i32, %arg1: memref<2x512xf32, #tpu.memory_space<vmem>>, %arg2: memref<2x512xf32, #tpu.memory_space<vmem>>, %arg3: memref<1xf32, #tpu.memory_space<smem>>, %arg4: memref<1x1xf32, #tpu.memory_space<vmem>>, %arg5: memref<2x1xf32, #tpu.memory_space<vmem>>, %arg6: memref<2x1xf32, #tpu.memory_space<vmem>>, %arg7: memref<2x1xf32, #tpu.memory_space<vmem>>, %arg8: memref<1x1xf32, #tpu.memory_space<vmem>>) attributes {dimension_semantics = [#tpu.dimension_semantics<arbitrary>], iteration_bounds = array<i64: 1>, scalar_prefetch = 0 : i64, scratch_operands = 4 : i64, tpu.core_type = #tpu.core_type<tc>, window_params = [{pipeline_mode = #tpu.pipeline_mode<synchronous>, transform_indices = @transform_0, window_bounds = array<i64: 2, 512>}, {transform_indices = @transform_1, window_bounds = array<i64: 2, 512>}, {transform_indices = @transform_2, window_bounds = array<i64: 1>}, {pipeline_mode = #tpu.pipeline_mode<synchronous>, transform_indices = @transform_3, window_bounds = array<i64: 1, 1>}]} {
    %c0_i32 = arith.constant 0 : i32
    %0 = arith.cmpi eq, %arg0, %c0_i32 : i32
    %1 = arith.extui %0 : i1 to i32
    %c0_i32_0 = arith.constant 0 : i32
    %2 = arith.cmpi ne, %1, %c0_i32_0 : i32
    scf.if %2 {
      %cst_34 = arith.constant 0xFF800000 : f32
      %63 = vector.broadcast %cst_34 : f32 to vector<2x1xf32>
      %c0_35 = arith.constant 0 : index
      %c0_36 = arith.constant 0 : index
      %64 = vector.load %arg5[%c0_35, %c0_36] : memref<2x1xf32, #tpu.memory_space<vmem>>, vector<2x1xf32>
      tpu.vector_store %arg5[%c0_35, %c0_36], %63 {strides = array<i32>} : memref<2x1xf32, #tpu.memory_space<vmem>>, vector<2x1xf32>,
      %cst_37 = arith.constant 0.000000e+00 : f32
      %65 = vector.broadcast %cst_37 : f32 to vector<2x1xf32>
      %c0_38 = arith.constant 0 : index
      %c0_39 = arith.constant 0 : index
      %66 = vector.load %arg6[%c0_38, %c0_39] : memref<2x1xf32, #tpu.memory_space<vmem>>, vector<2x1xf32>
      tpu.vector_store %arg6[%c0_38, %c0_39], %65 {strides = array<i32>} : memref<2x1xf32, #tpu.memory_space<vmem>>, vector<2x1xf32>,
      %cst_40 = arith.constant 0.000000e+00 : f32
      %67 = vector.broadcast %cst_40 : f32 to vector<2x1xf32>
      %c0_41 = arith.constant 0 : index
      %c0_42 = arith.constant 0 : index
      %68 = vector.load %arg7[%c0_41, %c0_42] : memref<2x1xf32, #tpu.memory_space<vmem>>, vector<2x1xf32>
      tpu.vector_store %arg7[%c0_41, %c0_42], %67 {strides = array<i32>} : memref<2x1xf32, #tpu.memory_space<vmem>>, vector<2x1xf32>,
      %cst_43 = arith.constant 0.000000e+00 : f32
      %69 = vector.broadcast %cst_43 : f32 to vector<1x1xf32>
      %c0_44 = arith.constant 0 : index
      %c0_45 = arith.constant 0 : index
      %70 = vector.load %arg8[%c0_44, %c0_45] : memref<1x1xf32, #tpu.memory_space<vmem>>, vector<1x1xf32>
      tpu.vector_store %arg8[%c0_44, %c0_45], %69 {strides = array<i32>} : memref<1x1xf32, #tpu.memory_space<vmem>>, vector<1x1xf32>,
    } else {
    }
    %c0 = arith.constant 0 : index
    %c0_1 = arith.constant 0 : index
    %3 = vector.load %arg1[%c0, %c0_1] : memref<2x512xf32, #tpu.memory_space<vmem>>, vector<2x512xf32>
    %4 = arith.truncf %3 : vector<2x512xf32> to vector<2x512xbf16>
    %c0_2 = arith.constant 0 : index
    %c0_3 = arith.constant 0 : index
    %5 = vector.load %arg2[%c0_2, %c0_3] : memref<2x512xf32, #tpu.memory_space<vmem>>, vector<2x512xf32>
    %6 = arith.truncf %5 : vector<2x512xf32> to vector<2x512xbf16>
    %c0_4 = arith.constant 0 : index
    %7 = memref.load %arg3[%c0_4] : memref<1xf32, #tpu.memory_space<smem>>
    %cst = arith.constant dense<0.000000e+00> : vector<2x2xf32>
    %8 = tpu.matmul %4, %6, %cst {dimension_numbers = #tpu.dot_dimension_numbers<[1], [1], [0], [0], [0, 0, 1, 0], [], []>} : vector<2x512xbf16>, vector<2x512xbf16>, vector<2x2xf32> -> vector<2x2xf32>
    %9 = vector.broadcast %7 : f32 to vector<2x2xf32>
    %10 = arith.mulf %8, %9 : vector<2x2xf32>
    %11 = tpu.iota {dimensions = array<i32: 0>} : vector<2x2xi32>
    %12 = tpu.iota {dimensions = array<i32: 1>} : vector<2x2xi32>
    %c2_i32 = arith.constant 2 : i32
    %13 = arith.muli %arg0, %c2_i32 : i32
    %14 = vector.broadcast %13 : i32 to vector<2x2xi32>
    %15 = arith.addi %12, %14 : vector<2x2xi32>
    %16 = arith.cmpi eq, %11, %15 : vector<2x2xi32>
    %c0_5 = arith.constant 0 : index
    %c0_6 = arith.constant 0 : index
    %17 = vector.load %arg5[%c0_5, %c0_6] : memref<2x1xf32, #tpu.memory_space<vmem>>, vector<2x1xf32>
    %cst_7 = arith.constant dense<0xFF800000> : vector<2xf32>
    %18 = vector.multi_reduction <maximumf>, %10, %cst_7 [1] : vector<2x2xf32> to vector<2xf32>
    %19 = vector.shape_cast %18 : vector<2xf32> to vector<2x1xf32>
    %20 = arith.maximumf %17, %19 : vector<2x1xf32>
    %c0_8 = arith.constant 0 : index
    %c0_9 = arith.constant 0 : index
    %21 = vector.load %arg5[%c0_8, %c0_9] : memref<2x1xf32, #tpu.memory_space<vmem>>, vector<2x1xf32>
    %22 = arith.subf %21, %20 : vector<2x1xf32>
    %23 = math.exp %22 : vector<2x1xf32>
    %c0_10 = arith.constant 0 : index
    %c0_11 = arith.constant 0 : index
    %24 = vector.load %arg6[%c0_10, %c0_11] : memref<2x1xf32, #tpu.memory_space<vmem>>, vector<2x1xf32>
    %25 = arith.mulf %23, %24 : vector<2x1xf32>
    %26 = vector.broadcast %20 : vector<2x1xf32> to vector<2x2xf32>
    %27 = arith.subf %10, %26 : vector<2x2xf32>
    %28 = math.exp %27 : vector<2x2xf32>
    %cst_12 = arith.constant dense<0.000000e+00> : vector<2xf32>
    %29 = vector.multi_reduction <add>, %28, %cst_12 [1] : vector<2x2xf32> to vector<2xf32>
    %30 = vector.shape_cast %29 : vector<2xf32> to vector<2x1xf32>
    %31 = arith.addf %25, %30 : vector<2x1xf32>
    %c0_13 = arith.constant 0 : index
    %c0_14 = arith.constant 0 : index
    %32 = vector.load %arg6[%c0_13, %c0_14] : memref<2x1xf32, #tpu.memory_space<vmem>>, vector<2x1xf32>
    tpu.vector_store %arg6[%c0_13, %c0_14], %31 {strides = array<i32>} : memref<2x1xf32, #tpu.memory_space<vmem>>, vector<2x1xf32>,
    %c0_15 = arith.constant 0 : index
    %c0_16 = arith.constant 0 : index
    %33 = vector.load %arg5[%c0_15, %c0_16] : memref<2x1xf32, #tpu.memory_space<vmem>>, vector<2x1xf32>
    tpu.vector_store %arg5[%c0_15, %c0_16], %20 {strides = array<i32>} : memref<2x1xf32, #tpu.memory_space<vmem>>, vector<2x1xf32>,
    %c0_17 = arith.constant 0 : index
    %c0_18 = arith.constant 0 : index
    %34 = vector.load %arg7[%c0_17, %c0_18] : memref<2x1xf32, #tpu.memory_space<vmem>>, vector<2x1xf32>
    %cst_19 = arith.constant 0.000000e+00 : f32
    %35 = vector.broadcast %cst_19 : f32 to vector<2x2xf32>
    %36 = arith.select %16, %10, %35 : vector<2x2xi1>, vector<2x2xf32>
    %cst_20 = arith.constant dense<0.000000e+00> : vector<2xf32>
    %37 = vector.multi_reduction <add>, %36, %cst_20 [1] : vector<2x2xf32> to vector<2xf32>
    %38 = vector.shape_cast %37 : vector<2xf32> to vector<2x1xf32>
    %39 = arith.addf %34, %38 : vector<2x1xf32>
    %c0_21 = arith.constant 0 : index
    %c0_22 = arith.constant 0 : index
    %40 = vector.load %arg7[%c0_21, %c0_22] : memref<2x1xf32, #tpu.memory_space<vmem>>, vector<2x1xf32>
    tpu.vector_store %arg7[%c0_21, %c0_22], %39 {strides = array<i32>} : memref<2x1xf32, #tpu.memory_space<vmem>>, vector<2x1xf32>,
    %cst_23 = arith.constant dense<0xFF800000> : vector<2xf32>
    %41 = vector.multi_reduction <maximumf>, %10, %cst_23 [0] : vector<2x2xf32> to vector<2xf32>
    %42 = vector.shape_cast %41 : vector<2xf32> to vector<1x2xf32>
    %43 = vector.broadcast %42 : vector<1x2xf32> to vector<2x2xf32>
    %44 = arith.subf %10, %43 : vector<2x2xf32>
    %45 = math.exp %44 : vector<2x2xf32>
    %cst_24 = arith.constant dense<0.000000e+00> : vector<2xf32>
    %46 = vector.multi_reduction <add>, %45, %cst_24 [0] : vector<2x2xf32> to vector<2xf32>
    %47 = vector.shape_cast %46 : vector<2xf32> to vector<1x2xf32>
    %48 = math.log %47 : vector<1x2xf32>
    %49 = arith.addf %48, %42 : vector<1x2xf32>
    %cst_25 = arith.constant 0.000000e+00 : f32
    %50 = vector.broadcast %cst_25 : f32 to vector<2x2xf32>
    %51 = arith.select %16, %10, %50 : vector<2x2xi1>, vector<2x2xf32>
    %cst_26 = arith.constant dense<0.000000e+00> : vector<2xf32>
    %52 = vector.multi_reduction <add>, %51, %cst_26 [0] : vector<2x2xf32> to vector<2xf32>
    %53 = vector.shape_cast %52 : vector<2xf32> to vector<1x2xf32>
    %54 = arith.subf %49, %53 : vector<1x2xf32>
    %cst_27 = arith.constant dense<0.000000e+00> : vector<1xf32>
    %55 = vector.multi_reduction <add>, %54, %cst_27 [1] : vector<1x2xf32> to vector<1xf32>
    %56 = vector.shape_cast %55 : vector<1xf32> to vector<1x1xf32>
    %c0_28 = arith.constant 0 : index
    %c0_29 = arith.constant 0 : index
    %57 = vector.load %arg8[%c0_28, %c0_29] : memref<1x1xf32, #tpu.memory_space<vmem>>, vector<1x1xf32>
    %58 = arith.addf %57, %56 : vector<1x1xf32>
    %c0_30 = arith.constant 0 : index
    %c0_31 = arith.constant 0 : index
    %59 = vector.load %arg8[%c0_30, %c0_31] : memref<1x1xf32, #tpu.memory_space<vmem>>, vector<1x1xf32>
    tpu.vector_store %arg8[%c0_30, %c0_31], %58 {strides = array<i32>} : memref<1x1xf32, #tpu.memory_space<vmem>>, vector<1x1xf32>,
    %c0_i32_32 = arith.constant 0 : i32
    %60 = arith.cmpi eq, %arg0, %c0_i32_32 : i32
    %61 = arith.extui %60 : i1 to i32
    %c0_i32_33 = arith.constant 0 : i32
    %62 = arith.cmpi ne, %61, %c0_i32_33 : i32
    scf.if %62 {
      %c0_34 = arith.constant 0 : index
      %c0_35 = arith.constant 0 : index
      %63 = vector.load %arg5[%c0_34, %c0_35] : memref<2x1xf32, #tpu.memory_space<vmem>>, vector<2x1xf32>
      %c0_36 = arith.constant 0 : index
      %c0_37 = arith.constant 0 : index
      %64 = vector.load %arg6[%c0_36, %c0_37] : memref<2x1xf32, #tpu.memory_space<vmem>>, vector<2x1xf32>
      %65 = math.log %64 : vector<2x1xf32>
      %66 = arith.addf %63, %65 : vector<2x1xf32>
      %c0_38 = arith.constant 0 : index
      %c0_39 = arith.constant 0 : index
      %67 = vector.load %arg7[%c0_38, %c0_39] : memref<2x1xf32, #tpu.memory_space<vmem>>, vector<2x1xf32>
      %68 = arith.subf %66, %67 : vector<2x1xf32>
      %cst_40 = arith.constant dense<0.000000e+00> : vector<1xf32>
      %69 = vector.multi_reduction <add>, %68, %cst_40 [0] : vector<2x1xf32> to vector<1xf32>
      %70 = vector.shape_cast %69 : vector<1xf32> to vector<1x1xf32>
      %c0_41 = arith.constant 0 : index
      %c0_42 = arith.constant 0 : index
      %71 = vector.load %arg8[%c0_41, %c0_42] : memref<1x1xf32, #tpu.memory_space<vmem>>, vector<1x1xf32>
      %72 = arith.addf %70, %71 : vector<1x1xf32>
      %cst_43 = arith.constant 2.500000e-01 : f32
      %73 = vector.broadcast %cst_43 : f32 to vector<1x1xf32>
      %74 = arith.mulf %72, %73 : vector<1x1xf32>
      %c0_44 = arith.constant 0 : index
      %c0_45 = arith.constant 0 : index
      %75 = vector.load %arg4[%c0_44, %c0_45] : memref<1x1xf32, #tpu.memory_space<vmem>>, vector<1x1xf32>
      tpu.vector_store %arg4[%c0_44, %c0_45], %74 {strides = array<i32>} : memref<1x1xf32, #tpu.memory_space<vmem>>, vector<1x1xf32>,
    } else {
    }
    return
  }
  func.func @transform_0(%arg0: i32) -> (i32, i32) {
    %c0_i32 = arith.constant 0 : i32
    %c0_i32_0 = arith.constant 0 : i32
    %c0_i32_1 = arith.constant 0 : i32
    return %c0_i32, %c0_i32_0 : i32, i32
  }
  func.func @transform_1(%arg0: i32) -> (i32, i32) {
    %c0_i32 = arith.constant 0 : i32
    %c0_i32_0 = arith.constant 0 : i32
    return %arg0, %c0_i32 : i32, i32
  }
  func.func @transform_2(%arg0: i32) -> i32 {
    %c0_i32 = arith.constant 0 : i32
    %c0_i32_0 = arith.constant 0 : i32
    return %c0_i32 : i32
  }
  func.func @transform_3(%arg0: i32) -> (i32, i32) {
    %c0_i32 = arith.constant 0 : i32
    %c0_i32_0 = arith.constant 0 : i32
    %c0_i32_1 = arith.constant 0 : i32
    return %c0_i32, %c0_i32_0 : i32, i32
  }
}

</mosaic_0001>

<llo_original>
// kernel: align_forward.5
$region0: #{align_forward.5}
  #allocation0 [shape = 'u32[]', space=smem, size = 0x4, offset = 0x4, fixed_abs, tag = 'smem constant byte address 0x4 - core index']
  #allocation1 [shape = 'u32[144,128]{1,0:T(1,128)}', space=vmem, size = 0x12000, scoped, tag = 'internal scratch']
  %s0 = inlined_call_operand.vmem [shape: f32[8,128], index: 0, kind: input, shape index: {}]
  %s1 = inlined_call_operand.vmem [shape: bf16[128,512], index: 1, kind: input, shape index: {}]
  %s2 = inlined_call_operand.vmem [shape: f32[1,512], index: 2, kind: input, shape index: {}]
  %s3 = inlined_call_operand.vmem [shape: f32[8,512], index: 3, kind: output, shape index: {}]
  %s4 = sld [smem:[#allocation0]]
  $region22: #{align_forward.5} parent=0
    _
  %s6 = ssub.s32 1, %s4
  %s7 = scalar_select 0, %s6, %s4
  // Predicated region
  $region2: #{align_forward.5} parent=0 // pred_check
    _
  $region3: #{align_forward.5} parent=0 // pred_check_branch
    %9 = sbr.rel (0) target = $region5
  $region4: #{align_forward.5} parent=0 // pred_region
    _
  $region5: #{align_forward.5} parent=0 // pred_fallthru
    _
  // Predicated region
  $region6: #{align_forward.5} parent=0 // pred_check
    _
  $region7: #{align_forward.5} parent=0 // pred_check_branch
    %11 = sbr.rel (0) target = $region9
  $region8: #{align_forward.5} parent=0 // pred_region
    _
  $region9: #{align_forward.5} parent=0 // pred_fallthru
    _
  // Predicated region
  $region10: #{align_forward.5} parent=0 // pred_check
    _
  $region11: #{align_forward.5} parent=0 // pred_check_branch
    %13 = sbr.rel (0) target = $region13
  $region12: #{align_forward.5} parent=0 // pred_region
    _
  $region13: #{align_forward.5} parent=0 // pred_fallthru
    _
  %v15 = vld [vmem:[%s0] sm:$0xff]
  %v16 = vpack.c.bf16 %v15, %v15
  %v17 = vld [vmem:[%s1] sm:$0xff]
  %v18 = vld [vmem:[%s1 + $0x8] sm:$0xff]
  %v19 = vld [vmem:[%s1 + $0x10] sm:$0xff]
  %v20 = vld [vmem:[%s1 + $0x18] sm:$0xff]
  %v21 = vld [vmem:[%s1 + $0x20] sm:$0xff]
  %v22 = vld [vmem:[%s1 + $0x28] sm:$0xff]
  %v23 = vld [vmem:[%s1 + $0x30] sm:$0xff]
  %v24 = vld [vmem:[%s1 + $0x38] sm:$0xff]
  %v25 = vld [vmem:[%s1 + $0x40] sm:$0xff]
  %v26 = vld [vmem:[%s1 + $0x48] sm:$0xff]
  %v27 = vld [vmem:[%s1 + $0x50] sm:$0xff]
  %v28 = vld [vmem:[%s1 + $0x58] sm:$0xff]
  %v29 = vld [vmem:[%s1 + $0x60] sm:$0xff]
  %v30 = vld [vmem:[%s1 + $0x68] sm:$0xff]
  %v31 = vld [vmem:[%s1 + $0x70] sm:$0xff]
  %v32 = vld [vmem:[%s1 + $0x78] sm:$0xff]
  %v33 = vld [vmem:[%s1 + $0x80] sm:$0xff]
  %v34 = vld [vmem:[%s1 + $0x88] sm:$0xff]
  %v35 = vld [vmem:[%s1 + $0x90] sm:$0xff]
  %v36 = vld [vmem:[%s1 + $0x98] sm:$0xff]
  %v37 = vld [vmem:[%s1 + $0xa0] sm:$0xff]
  %v38 = vld [vmem:[%s1 + $0xa8] sm:$0xff]
  %v39 = vld [vmem:[%s1 + $0xb0] sm:$0xff]
  %v40 = vld [vmem:[%s1 + $0xb8] sm:$0xff]
  %v41 = vld [vmem:[%s1 + $0xc0] sm:$0xff]
  %v42 = vld [vmem:[%s1 + $0xc8] sm:$0xff]
  %v43 = vld [vmem:[%s1 + $0xd0] sm:$0xff]
  %v44 = vld [vmem:[%s1 + $0xd8] sm:$0xff]
  %v45 = vld [vmem:[%s1 + $0xe0] sm:$0xff]
  %v46 = vld [vmem:[%s1 + $0xe8] sm:$0xff]
  %v47 = vld [vmem:[%s1 + $0xf0] sm:$0xff]
  %v48 = vld [vmem:[%s1 + $0xf8] sm:$0xff]
  %v49 = vld [vmem:[%s2] sm:$0xf]
  %v51 = vlaneseq
  %v52 = vshrl.u32 %v51, 7
  %v53 = vsub.s32 0, %v52
  %v54 = vrot.slane %v49, %v53
  %v55 = vlaneseq
  %v56 = vshrl.u32 %v55, 7
  %v57 = vsub.s32 1, %v56
  %v58 = vrot.slane %v49, %v57
  %v59 = vlaneseq
  %v60 = vshrl.u32 %v59, 7
  %v61 = vsub.s32 2, %v60
  %v62 = vrot.slane %v49, %v61
  %v63 = vlaneseq
  %v64 = vshrl.u32 %v63, 7
  %v65 = vsub.s32 3, %v64
  %v66 = vrot.slane %v49, %v65
  %v103 = vunpack.c.l.b16 %v17
  %v104 = vunpack.c.h.b16 %v17
  %v105 = vunpack.c.l.b16 %v18
  %v106 = vunpack.c.h.b16 %v18
  %v107 = vunpack.c.l.b16 %v19
  %v108 = vunpack.c.h.b16 %v19
  %v109 = vunpack.c.l.b16 %v20
  %v110 = vunpack.c.h.b16 %v20
  %v111 = vunpack.c.l.b16 %v21
  %v112 = vunpack.c.h.b16 %v21
  %v113 = vunpack.c.l.b16 %v22
  %v114 = vunpack.c.h.b16 %v22
  %v115 = vunpack.c.l.b16 %v23
  %v116 = vunpack.c.h.b16 %v23
  %v117 = vunpack.c.l.b16 %v24
  %v118 = vunpack.c.h.b16 %v24
  %v119 = vunpack.c.l.b16 %v25
  %v120 = vunpack.c.h.b16 %v25
  %v121 = vunpack.c.l.b16 %v26
  %v122 = vunpack.c.h.b16 %v26
  %v123 = vunpack.c.l.b16 %v27
  %v124 = vunpack.c.h.b16 %v27
  %v125 = vunpack.c.l.b16 %v28
  %v126 = vunpack.c.h.b16 %v28
  %v127 = vunpack.c.l.b16 %v29
  %v128 = vunpack.c.h.b16 %v29
  %v129 = vunpack.c.l.b16 %v30
  %v130 = vunpack.c.h.b16 %v30
  %v131 = vunpack.c.l.b16 %v31
  %v132 = vunpack.c.h.b16 %v31
  %v133 = vunpack.c.l.b16 %v32
  %v134 = vunpack.c.h.b16 %v32
  %v135 = vunpack.c.l.b16 %v33
  %v136 = vunpack.c.h.b16 %v33
  %v137 = vunpack.c.l.b16 %v34
  %v138 = vunpack.c.h.b16 %v34
  %v139 = vunpack.c.l.b16 %v35
  %v140 = vunpack.c.h.b16 %v35
  %v141 = vunpack.c.l.b16 %v36
  %v142 = vunpack.c.h.b16 %v36
  %v143 = vunpack.c.l.b16 %v37
  %v144 = vunpack.c.h.b16 %v37
  %v145 = vunpack.c.l.b16 %v38
  %v146 = vunpack.c.h.b16 %v38
  %v147 = vunpack.c.l.b16 %v39
  %v148 = vunpack.c.h.b16 %v39
  %v149 = vunpack.c.l.b16 %v40
  %v150 = vunpack.c.h.b16 %v40
  %v151 = vunpack.c.l.b16 %v41
  %v152 = vunpack.c.h.b16 %v41
  %v153 = vunpack.c.l.b16 %v42
  %v154 = vunpack.c.h.b16 %v42
  %v155 = vunpack.c.l.b16 %v43
  %v156 = vunpack.c.h.b16 %v43
  %v157 = vunpack.c.l.b16 %v44
  %v158 = vunpack.c.h.b16 %v44
  %v159 = vunpack.c.l.b16 %v45
  %v160 = vunpack.c.h.b16 %v45
  %v161 = vunpack.c.l.b16 %v46
  %v162 = vunpack.c.h.b16 %v46
  %v163 = vunpack.c.l.b16 %v47
  %v164 = vunpack.c.h.b16 %v47
  %v165 = vunpack.c.l.b16 %v48
  %v166 = vunpack.c.h.b16 %v48
  %v167 = vpack.c.b16 %v107, %v103
  %v168 = vpack.c.b16 %v108, %v104
  %v169 = vpack.c.b16 %v109, %v105
  %v170 = vpack.c.b16 %v110, %v106
  %v171 = vpack.c.b16 %v115, %v111
  %v172 = vpack.c.b16 %v116, %v112
  %v173 = vpack.c.b16 %v117, %v113
  %v174 = vpack.c.b16 %v118, %v114
  %v175 = vpack.c.b16 %v123, %v119
  %v176 = vpack.c.b16 %v124, %v120
  %v177 = vpack.c.b16 %v125, %v121
  %v178 = vpack.c.b16 %v126, %v122
  %v179 = vpack.c.b16 %v131, %v127
  %v180 = vpack.c.b16 %v132, %v128
  %v181 = vpack.c.b16 %v133, %v129
  %v182 = vpack.c.b16 %v134, %v130
  %v183 = vpack.c.b16 %v139, %v135
  %v184 = vpack.c.b16 %v140, %v136
  %v185 = vpack.c.b16 %v141, %v137
  %v186 = vpack.c.b16 %v142, %v138
  %v187 = vpack.c.b16 %v147, %v143
  %v188 = vpack.c.b16 %v148, %v144
  %v189 = vpack.c.b16 %v149, %v145
  %v190 = vpack.c.b16 %v150, %v146
  %v191 = vpack.c.b16 %v155, %v151
  %v192 = vpack.c.b16 %v156, %v152
  %v193 = vpack.c.b16 %v157, %v153
  %v194 = vpack.c.b16 %v158, %v154
  %v195 = vpack.c.b16 %v163, %v159
  %v196 = vpack.c.b16 %v164, %v160
  %v197 = vpack.c.b16 %v165, %v161
  %v198 = vpack.c.b16 %v166, %v162
  %231 = vmatprep.subr.bf16.mxu0 %v196
  %232 = vmatpush1.bf16.msra.mxu0 %v195
  %233 = vmatprep.subr.bf16.mxu0 %v192
  %234 = vmatpush1.bf16.msra.mxu0 %v191
  %235 = vmatprep.subr.bf16.mxu0 %v188
  %236 = vmatpush1.bf16.msra.mxu0 %v187
  %237 = vmatprep.subr.bf16.mxu0 %v184
  %238 = vmatpush1.bf16.msra.mxu0 %v183
  %239 = vmatprep.subr.bf16.mxu0 %v180
  %240 = vmatpush1.bf16.msra.mxu0 %v179
  %241 = vmatprep.subr.bf16.mxu0 %v176
  %242 = vmatpush1.bf16.msra.mxu0 %v175
  %243 = vmatprep.subr.bf16.mxu0 %v172
  %244 = vmatpush1.bf16.msra.mxu0 %v171
  %245 = vmatprep.subr.bf16.mxu0 %v168
  %246 = vmatpush1.bf16.msra.mxu0 %v167
  %247 = vmatprep.subr.bf16.mxu0 0
  %248 = vmatpush2.bf16.msra.mxu0 0
  %249 = vmatprep.subr.bf16.mxu0 0
  %250 = vmatpush2.bf16.msra.mxu0 0
  %251 = vmatprep.subr.bf16.mxu0 0
  %252 = vmatpush2.bf16.msra.mxu0 0
  %253 = vmatprep.subr.bf16.mxu0 0
  %254 = vmatpush2.bf16.msra.mxu0 0
  %255 = vmatprep.subr.bf16.mxu0 0
  %256 = vmatpush2.bf16.msra.mxu0 0
  %257 = vmatprep.subr.bf16.mxu0 0
  %258 = vmatpush2.bf16.msra.mxu0 0
  %259 = vmatprep.subr.bf16.mxu0 0
  %260 = vmatpush2.bf16.msra.mxu0 0
  %261 = vmatprep.subr.bf16.mxu0 0
  %262 = vmatpush2.bf16.msra.mxu0 0
  %263 = vmatprep.mubr.bf16.mxu0 0
  %264 = vmatmul.mubr.bf16.gmra.mxu0 %v16
  %v265 = vpop.f32.mrf.mxu0
  %v266 = vadd.f32 %v54, %v265
  %v267 = vpop.f32.mrf.mxu0
  %v268 = vadd.f32 %v58, %v267
  %v269 = vpop.f32.mrf.mxu0
  %v270 = vpop.f32.mrf.mxu0
  %271 = vdwg.mxu0
  %272 = vmatprep.subr.bf16.mxu0 %v198
  %273 = vmatpush1.bf16.msra.mxu0 %v197
  %274 = vmatprep.subr.bf16.mxu0 %v194
  %275 = vmatpush1.bf16.msra.mxu0 %v193
  %276 = vmatprep.subr.bf16.mxu0 %v190
  %277 = vmatpush1.bf16.msra.mxu0 %v189
  %278 = vmatprep.subr.bf16.mxu0 %v186
  %279 = vmatpush1.bf16.msra.mxu0 %v185
  %280 = vmatprep.subr.bf16.mxu0 %v182
  %281 = vmatpush1.bf16.msra.mxu0 %v181
  %282 = vmatprep.subr.bf16.mxu0 %v178
  %283 = vmatpush1.bf16.msra.mxu0 %v177
  %284 = vmatprep.subr.bf16.mxu0 %v174
  %285 = vmatpush1.bf16.msra.mxu0 %v173
  %286 = vmatprep.subr.bf16.mxu0 %v170
  %287 = vmatpush1.bf16.msra.mxu0 %v169
  %288 = vmatprep.subr.bf16.mxu0 0
  %289 = vmatpush2.bf16.msra.mxu0 0
  %290 = vmatprep.subr.bf16.mxu0 0
  %291 = vmatpush2.bf16.msra.mxu0 0
  %292 = vmatprep.subr.bf16.mxu0 0
  %293 = vmatpush2.bf16.msra.mxu0 0
  %294 = vmatprep.subr.bf16.mxu0 0
  %295 = vmatpush2.bf16.msra.mxu0 0
  %296 = vmatprep.subr.bf16.mxu0 0
  %297 = vmatpush2.bf16.msra.mxu0 0
  %298 = vmatprep.subr.bf16.mxu0 0
  %299 = vmatpush2.bf16.msra.mxu0 0
  %300 = vmatprep.subr.bf16.mxu0 0
  %301 = vmatpush2.bf16.msra.mxu0 0
  %302 = vmatprep.subr.bf16.mxu0 0
  %303 = vmatpush2.bf16.msra.mxu0 0
  %304 = vmatprep.mubr.bf16.mxu0 0
  %305 = vmatmul.mubr.bf16.gmra.mxu0 %v16
  %v306 = vpop.f32.mrf.mxu0
  %v307 = vadd.f32 %v62, %v306
  %v308 = vpop.f32.mrf.mxu0
  %v309 = vadd.f32 %v66, %v308
  %v310 = vpop.f32.mrf.mxu0
  %v311 = vpop.f32.mrf.mxu0
  %312 = vdwg.mxu0
  %v313 = vmul.f32 %v266, %v266
  %v314 = vmul.f32 %v268, %v268
  %v315 = vmul.f32 %v307, %v307
  %v316 = vmul.f32 %v309, %v309
  %v317 = vadd.f32 %v313, %v314
  %v318 = vadd.f32 %v317, %v315
  %v319 = vadd.f32 %v318, %v316
  %320 = vadd.xlane.f32.xlu0 %v319
  %v321 = vpop.xlane.xlu0 %320
  %v322 = vmax.f32 %v321, 1e-24
  %v323 = vrsqrt.pop %v322
  %v324 = vmul.f32 %v266, %v323
  %v325 = vmul.f32 %v268, %v323
  %v326 = vmul.f32 %v307, %v323
  %v327 = vmul.f32 %v309, %v323
  %328 = vst [vmem:[%s3] sm:$0xff] %v324
  %329 = vst [vmem:[%s3 + $0x8] sm:$0xff] %v325
  %330 = vst [vmem:[%s3 + $0x10] sm:$0xff] %v326
  %331 = vst [vmem:[%s3 + $0x18] sm:$0xff] %v327
  // Predicated region
  $region14: #{align_forward.5} parent=0 // pred_check
    _
  $region15: #{align_forward.5} parent=0 // pred_check_branch
    %333 = sbr.rel (0) target = $region17
  $region16: #{align_forward.5} parent=0 // pred_region
    _
  $region17: #{align_forward.5} parent=0 // pred_fallthru
    _
  // Predicated region
  $region18: #{align_forward.5} parent=0 // pred_check
    _
  $region19: #{align_forward.5} parent=0 // pred_check_branch
    %335 = sbr.rel (0) target = $region21
  $region20: #{align_forward.5} parent=0 // pred_region
    _
  $region21: #{align_forward.5} parent=0 // pred_fallthru
    _

// kernel: align_forward.7
$region0: #{align_forward.7}
  #allocation0 [shape = 'u32[]', space=smem, size = 0x4, offset = 0x4, fixed_abs, tag = 'smem constant byte address 0x4 - core index']
  #allocation1 [shape = 'u32[144,128]{1,0:T(1,128)}', space=vmem, size = 0x12000, scoped, tag = 'internal scratch']
  %s0 = inlined_call_operand.vmem [shape: f32[2,512], index: 0, kind: input, shape index: {}]
  %s1 = inlined_call_operand.vmem [shape: f32[2,100], index: 1, kind: input, shape index: {}]
  %s2 = inlined_call_operand.vmem [shape: bf16[100,512], index: 2, kind: input, shape index: {}]
  %s3 = inlined_call_operand.vmem [shape: f32[1,512], index: 3, kind: input, shape index: {}]
  %s4 = inlined_call_operand.vmem [shape: f32[2,512], index: 4, kind: input, shape index: {}]
  %s5 = inlined_call_operand.vmem [shape: f32[2,512], index: 5, kind: input, shape index: {}]
  %s6 = inlined_call_operand.vmem [shape: f32[2,3], index: 6, kind: output, shape index: {}]
  %s7 = sld [smem:[#allocation0]]
  $region34: #{align_forward.7} parent=0
    _
  %s9 = ssub.s32 1, %s7
  %s10 = scalar_select 0, %s9, %s7
  // Predicated region
  $region2: #{align_forward.7} parent=0 // pred_check
    _
  $region3: #{align_forward.7} parent=0 // pred_check_branch
    %12 = sbr.rel (0) target = $region5
  $region4: #{align_forward.7} parent=0 // pred_region
    _
  $region5: #{align_forward.7} parent=0 // pred_fallthru
    _
  // Predicated region
  $region6: #{align_forward.7} parent=0 // pred_check
    _
  $region7: #{align_forward.7} parent=0 // pred_check_branch
    %14 = sbr.rel (0) target = $region9
  $region8: #{align_forward.7} parent=0 // pred_region
    _
  $region9: #{align_forward.7} parent=0 // pred_fallthru
    _
  // Predicated region
  $region10: #{align_forward.7} parent=0 // pred_check
    _
  $region11: #{align_forward.7} parent=0 // pred_check_branch
    %16 = sbr.rel (0) target = $region13
  $region12: #{align_forward.7} parent=0 // pred_region
    _
  $region13: #{align_forward.7} parent=0 // pred_fallthru
    _
  // Predicated region
  $region14: #{align_forward.7} parent=0 // pred_check
    _
  $region15: #{align_forward.7} parent=0 // pred_check_branch
    %18 = sbr.rel (0) target = $region17
  $region16: #{align_forward.7} parent=0 // pred_region
    _
  $region17: #{align_forward.7} parent=0 // pred_fallthru
    _
  // Predicated region
  $region18: #{align_forward.7} parent=0 // pred_check
    _
  $region19: #{align_forward.7} parent=0 // pred_check_branch
    %20 = sbr.rel (0) target = $region21
  $region20: #{align_forward.7} parent=0 // pred_region
    _
  $region21: #{align_forward.7} parent=0 // pred_fallthru
    _
  // Predicated region
  $region22: #{align_forward.7} parent=0 // pred_check
    _
  $region23: #{align_forward.7} parent=0 // pred_check_branch
    %22 = sbr.rel (0) target = $region25
  $region24: #{align_forward.7} parent=0 // pred_region
    _
  $region25: #{align_forward.7} parent=0 // pred_fallthru
    _
  %v24 = vld [vmem:[%s1] sm:$0x3]
  %v25 = vpack.c.bf16 %v24, %v24
  %v26 = vld [vmem:[%s2] sm:$0xff]
  %v27 = vld [vmem:[%s2 + $0x8] sm:$0xff]
  %v28 = vld [vmem:[%s2 + $0x10] sm:$0xff]
  %v29 = vld [vmem:[%s2 + $0x18] sm:$0xff]
  %v30 = vld [vmem:[%s2 + $0x20] sm:$0xff]
  %v31 = vld [vmem:[%s2 + $0x28] sm:$0xff]
  %v32 = vld [vmem:[%s2 + $0x30] sm:$0xff]
  %v33 = vld [vmem:[%s2 + $0x38] sm:$0xff]
  %v34 = vld [vmem:[%s2 + $0x40] sm:$0xff]
  %v35 = vld [vmem:[%s2 + $0x48] sm:$0xff]
  %v36 = vld [vmem:[%s2 + $0x50] sm:$0xff]
  %v37 = vld [vmem:[%s2 + $0x58] sm:$0xff]
  %v38 = vld [vmem:[%s2 + $0x60] sm:$0xff]
  %v39 = vld [vmem:[%s2 + $0x68] sm:$0xff]
  %v40 = vld [vmem:[%s2 + $0x70] sm:$0xff]
  %v41 = vld [vmem:[%s2 + $0x78] sm:$0xff]
  %v42 = vld [vmem:[%s2 + $0x80] sm:$0xff]
  %v43 = vld [vmem:[%s2 + $0x88] sm:$0xff]
  %v44 = vld [vmem:[%s2 + $0x90] sm:$0xff]
  %v45 = vld [vmem:[%s2 + $0x98] sm:$0xff]
  %v46 = vld [vmem:[%s2 + $0xa0] sm:$0xff]
  %v47 = vld [vmem:[%s2 + $0xa8] sm:$0xff]
  %v48 = vld [vmem:[%s2 + $0xb0] sm:$0xff]
  %v49 = vld [vmem:[%s2 + $0xb8] sm:$0xff]
  %v50 = vld [vmem:[%s2 + $0xc0] sm:$0x33]
  %v51 = vld [vmem:[%s2 + $0xc8] sm:$0x33]
  %v52 = vld [vmem:[%s3] sm:$0xf]
  %v54 = vlaneseq
  %v55 = vshrl.u32 %v54, 7
  %v56 = vsub.s32 0, %v55
  %v57 = vrot.slane %v52, %v56
  %v58 = vlaneseq
  %v59 = vshrl.u32 %v58, 7
  %v60 = vsub.s32 1, %v59
  %v61 = vrot.slane %v52, %v60
  %v62 = vlaneseq
  %v63 = vshrl.u32 %v62, 7
  %v64 = vsub.s32 2, %v63
  %v65 = vrot.slane %v52, %v64
  %v66 = vlaneseq
  %v67 = vshrl.u32 %v66, 7
  %v68 = vsub.s32 3, %v67
  %v69 = vrot.slane %v52, %v68
  %v100 = vunpack.c.l.b16 %v26
  %v101 = vunpack.c.h.b16 %v26
  %v102 = vunpack.c.l.b16 %v27
  %v103 = vunpack.c.h.b16 %v27
  %v104 = vunpack.c.l.b16 %v28
  %v105 = vunpack.c.h.b16 %v28
  %v106 = vunpack.c.l.b16 %v29
  %v107 = vunpack.c.h.b16 %v29
  %v108 = vunpack.c.l.b16 %v30
  %v109 = vunpack.c.h.b16 %v30
  %v110 = vunpack.c.l.b16 %v31
  %v111 = vunpack.c.h.b16 %v31
  %v112 = vunpack.c.l.b16 %v32
  %v113 = vunpack.c.h.b16 %v32
  %v114 = vunpack.c.l.b16 %v33
  %v115 = vunpack.c.h.b16 %v33
  %v116 = vunpack.c.l.b16 %v34
  %v117 = vunpack.c.h.b16 %v34
  %v118 = vunpack.c.l.b16 %v35
  %v119 = vunpack.c.h.b16 %v35
  %v120 = vunpack.c.l.b16 %v36
  %v121 = vunpack.c.h.b16 %v36
  %v122 = vunpack.c.l.b16 %v37
  %v123 = vunpack.c.h.b16 %v37
  %v124 = vunpack.c.l.b16 %v38
  %v125 = vunpack.c.h.b16 %v38
  %v126 = vunpack.c.l.b16 %v39
  %v127 = vunpack.c.h.b16 %v39
  %v128 = vunpack.c.l.b16 %v40
  %v129 = vunpack.c.h.b16 %v40
  %v130 = vunpack.c.l.b16 %v41
  %v131 = vunpack.c.h.b16 %v41
  %v132 = vunpack.c.l.b16 %v42
  %v133 = vunpack.c.h.b16 %v42
  %v134 = vunpack.c.l.b16 %v43
  %v135 = vunpack.c.h.b16 %v43
  %v136 = vunpack.c.l.b16 %v44
  %v137 = vunpack.c.h.b16 %v44
  %v138 = vunpack.c.l.b16 %v45
  %v139 = vunpack.c.h.b16 %v45
  %v140 = vunpack.c.l.b16 %v46
  %v141 = vunpack.c.h.b16 %v46
  %v142 = vunpack.c.l.b16 %v47
  %v143 = vunpack.c.h.b16 %v47
  %v144 = vunpack.c.l.b16 %v48
  %v145 = vunpack.c.h.b16 %v48
  %v146 = vunpack.c.l.b16 %v49
  %v147 = vunpack.c.h.b16 %v49
  %v148 = vunpack.c.l.b16 %v50
  %v149 = vunpack.c.h.b16 %v50
  %v150 = vunpack.c.l.b16 %v51
  %v151 = vunpack.c.h.b16 %v51
  %v152 = vpack.c.b16 %v104, %v100
  %v153 = vpack.c.b16 %v105, %v101
  %v154 = vpack.c.b16 %v106, %v102
  %v155 = vpack.c.b16 %v107, %v103
  %v156 = vpack.c.b16 %v112, %v108
  %v157 = vpack.c.b16 %v113, %v109
  %v158 = vpack.c.b16 %v114, %v110
  %v159 = vpack.c.b16 %v115, %v111
  %v160 = vpack.c.b16 %v120, %v116
  %v161 = vpack.c.b16 %v121, %v117
  %v162 = vpack.c.b16 %v122, %v118
  %v163 = vpack.c.b16 %v123, %v119
  %v164 = vpack.c.b16 %v128, %v124
  %v165 = vpack.c.b16 %v129, %v125
  %v166 = vpack.c.b16 %v130, %v126
  %v167 = vpack.c.b16 %v131, %v127
  %v168 = vpack.c.b16 %v136, %v132
  %v169 = vpack.c.b16 %v137, %v133
  %v170 = vpack.c.b16 %v138, %v134
  %v171 = vpack.c.b16 %v139, %v135
  %v172 = vpack.c.b16 %v144, %v140
  %v173 = vpack.c.b16 %v145, %v141
  %v174 = vpack.c.b16 %v146, %v142
  %v175 = vpack.c.b16 %v147, %v143
  %v176 = vpack.c.b16 %v148, %v148
  %v177 = vpack.c.b16 %v149, %v149
  %v178 = vpack.c.b16 %v150, %v150
  %v179 = vpack.c.b16 %v151, %v151
  %vm204 = vcmask 818176
  %v206 = vsel %vm204, %v25, 0
  %vm208 = vcmask 1041408
  %v210 = vsel %vm208, %v176, 0
  %v213 = vsel %vm208, %v177, 0
  %v216 = vsel %vm208, %v178, 0
  %v219 = vsel %vm208, %v179, 0
  %221 = vmatprep.subr.bf16.mxu0 0
  %222 = vmatpush1.bf16.msra.mxu0 0
  %223 = vmatprep.subr.bf16.mxu0 %v213
  %224 = vmatpush1.bf16.msra.mxu0 %v210
  %225 = vmatprep.subr.bf16.mxu0 %v173
  %226 = vmatpush1.bf16.msra.mxu0 %v172
  %227 = vmatprep.subr.bf16.mxu0 %v169
  %228 = vmatpush1.bf16.msra.mxu0 %v168
  %229 = vmatprep.subr.bf16.mxu0 %v165
  %230 = vmatpush1.bf16.msra.mxu0 %v164
  %231 = vmatprep.subr.bf16.mxu0 %v161
  %232 = vmatpush1.bf16.msra.mxu0 %v160
  %233 = vmatprep.subr.bf16.mxu0 %v157
  %234 = vmatpush1.bf16.msra.mxu0 %v156
  %235 = vmatprep.subr.bf16.mxu0 %v153
  %236 = vmatpush1.bf16.msra.mxu0 %v152
  %237 = vmatprep.subr.bf16.mxu0 0
  %238 = vmatpush2.bf16.msra.mxu0 0
  %239 = vmatprep.subr.bf16.mxu0 0
  %240 = vmatpush2.bf16.msra.mxu0 0
  %241 = vmatprep.subr.bf16.mxu0 0
  %242 = vmatpush2.bf16.msra.mxu0 0
  %243 = vmatprep.subr.bf16.mxu0 0
  %244 = vmatpush2.bf16.msra.mxu0 0
  %245 = vmatprep.subr.bf16.mxu0 0
  %246 = vmatpush2.bf16.msra.mxu0 0
  %247 = vmatprep.subr.bf16.mxu0 0
  %248 = vmatpush2.bf16.msra.mxu0 0
  %249 = vmatprep.subr.bf16.mxu0 0
  %250 = vmatpush2.bf16.msra.mxu0 0
  %251 = vmatprep.subr.bf16.mxu0 0
  %252 = vmatpush2.bf16.msra.mxu0 0
  %253 = vmatprep.mubr.bf16.mxu0 0
  %254 = vmatmul.mubr.bf16.gmra.mxu0 %v206
  %v255 = vpop.f32.mrf.mxu0
  %v256 = vadd.f32 %v57, %v255
  %v257 = vpop.f32.mrf.mxu0
  %v258 = vadd.f32 %v61, %v257
  %v259 = vpop.f32.mrf.mxu0
  %v260 = vpop.f32.mrf.mxu0
  %261 = vdwg.mxu0
  %262 = vmatprep.subr.bf16.mxu0 0
  %263 = vmatpush1.bf16.msra.mxu0 0
  %264 = vmatprep.subr.bf16.mxu0 %v219
  %265 = vmatpush1.bf16.msra.mxu0 %v216
  %266 = vmatprep.subr.bf16.mxu0 %v175
  %267 = vmatpush1.bf16.msra.mxu0 %v174
  %268 = vmatprep.subr.bf16.mxu0 %v171
  %269 = vmatpush1.bf16.msra.mxu0 %v170
  %270 = vmatprep.subr.bf16.mxu0 %v167
  %271 = vmatpush1.bf16.msra.mxu0 %v166
  %272 = vmatprep.subr.bf16.mxu0 %v163
  %273 = vmatpush1.bf16.msra.mxu0 %v162
  %274 = vmatprep.subr.bf16.mxu0 %v159
  %275 = vmatpush1.bf16.msra.mxu0 %v158
  %276 = vmatprep.subr.bf16.mxu0 %v155
  %277 = vmatpush1.bf16.msra.mxu0 %v154
  %278 = vmatprep.subr.bf16.mxu0 0
  %279 = vmatpush2.bf16.msra.mxu0 0
  %280 = vmatprep.subr.bf16.mxu0 0
  %281 = vmatpush2.bf16.msra.mxu0 0
  %282 = vmatprep.subr.bf16.mxu0 0
  %283 = vmatpush2.bf16.msra.mxu0 0
  %284 = vmatprep.subr.bf16.mxu0 0
  %285 = vmatpush2.bf16.msra.mxu0 0
  %286 = vmatprep.subr.bf16.mxu0 0
  %287 = vmatpush2.bf16.msra.mxu0 0
  %288 = vmatprep.subr.bf16.mxu0 0
  %289 = vmatpush2.bf16.msra.mxu0 0
  %290 = vmatprep.subr.bf16.mxu0 0
  %291 = vmatpush2.bf16.msra.mxu0 0
  %292 = vmatprep.subr.bf16.mxu0 0
  %293 = vmatpush2.bf16.msra.mxu0 0
  %294 = vmatprep.mubr.bf16.mxu0 0
  %295 = vmatmul.mubr.bf16.gmra.mxu0 %v206
  %v296 = vpop.f32.mrf.mxu0
  %v297 = vadd.f32 %v65, %v296
  %v298 = vpop.f32.mrf.mxu0
  %v299 = vadd.f32 %v69, %v298
  %v300 = vpop.f32.mrf.mxu0
  %v301 = vpop.f32.mrf.mxu0
  %302 = vdwg.mxu0
  %v303 = vld [vmem:[%s0] sm:$0xff]
  %v304 = vmul.f32 %v303, %v303
  %v306 = vcombine.high %v304, %v304
  %v308 = vunpack.c.l.s4 1983009808
  %v309 = vunpack.c.0.s8 %v308
  %v310 = vlaneseq
  %v311 = vshrl.u32 %v310, 7
  %v312 = vsub.s32 %v309, %v311
  %v313 = vrot.slane %v304, %v312
  %v315 = vunpack.c.l.s4 1983009808
  %v316 = vunpack.c.0.s8 %v315
  %v317 = vlaneseq
  %v318 = vshrl.u32 %v317, 7
  %v319 = vsub.s32 %v316, %v318
  %v320 = vrot.slane %v306, %v319
  %v321 = vcombine.high %v313, %v313
  %v322 = vcombine.high %v320, %v320
  %v327 = vsel %vm208, %v313, 0.0
  %v328 = vsel %vm208, %v321, 0.0
  %v329 = vadd.f32 %v327, %v328
  %v330 = vsel %vm208, %v320, 0.0
  %v331 = vadd.f32 %v329, %v330
  %v332 = vsel %vm208, %v322, 0.0
  %v333 = vadd.f32 %v331, %v332
  %334 = vadd.xlane.f32.xlu0 %v333
  %v335 = vpop.xlane.xlu0 %334
  %v336 = vmax.f32 %v335, 1e-24
  %v337 = vrsqrt.pop %v336
  %v340 = vunpack.c.l.s4 269488144
  %v341 = vunpack.c.0.s8 %v340
  %v342 = vlaneseq
  %v343 = vshrl.u32 %v342, 7
  %v344 = vsub.s32 %v341, %v343
  %v345 = vrot.slane %v337, %v344
  %v347 = vmul.f32 %v303, %v345
  %v348 = vmul.f32 %v256, %v256
  %v349 = vmul.f32 %v258, %v258
  %v350 = vmul.f32 %v297, %v297
  %v351 = vmul.f32 %v299, %v299
  %v352 = vsel %vm208, %v348, 0.0
  %v353 = vsel %vm208, %v349, 0.0
  %v354 = vadd.f32 %v352, %v353
  %v355 = vsel %vm208, %v350, 0.0
  %v356 = vadd.f32 %v354, %v355
  %v357 = vsel %vm208, %v351, 0.0
  %v358 = vadd.f32 %v356, %v357
  %359 = vadd.xlane.f32.xlu0 %v358
  %v360 = vpop.xlane.xlu0 %359
  %v361 = vmax.f32 %v360, 1e-24
  %v362 = vrsqrt.pop %v361
  %v363 = vmul.f32 %v256, %v362
  %v364 = vmul.f32 %v258, %v362
  %v365 = vmul.f32 %v297, %v362
  %v366 = vmul.f32 %v299, %v362
  %v367 = vld [vmem:[%s4] sm:$0xff]
  %v368 = vmul.f32 %v367, %v367
  %v370 = vcombine.high %v368, %v368
  %v372 = vunpack.c.l.s4 1983009808
  %v373 = vunpack.c.0.s8 %v372
  %v374 = vlaneseq
  %v375 = vshrl.u32 %v374, 7
  %v376 = vsub.s32 %v373, %v375
  %v377 = vrot.slane %v368, %v376
  %v379 = vunpack.c.l.s4 1983009808
  %v380 = vunpack.c.0.s8 %v379
  %v381 = vlaneseq
  %v382 = vshrl.u32 %v381, 7
  %v383 = vsub.s32 %v380, %v382
  %v384 = vrot.slane %v370, %v383
  %v385 = vcombine.high %v377, %v377
  %v386 = vcombine.high %v384, %v384
  %v391 = vsel %vm208, %v377, 0.0
  %v392 = vsel %vm208, %v385, 0.0
  %v393 = vadd.f32 %v391, %v392
  %v394 = vsel %vm208, %v384, 0.0
  %v395 = vadd.f32 %v393, %v394
  %v396 = vsel %vm208, %v386, 0.0
  %v397 = vadd.f32 %v395, %v396
  %398 = vadd.xlane.f32.xlu0 %v397
  %v399 = vpop.xlane.xlu0 %398
  %v400 = vmax.f32 %v399, 1e-24
  %v401 = vrsqrt.pop %v400
  %v404 = vunpack.c.l.s4 269488144
  %v405 = vunpack.c.0.s8 %v404
  %v406 = vlaneseq
  %v407 = vshrl.u32 %v406, 7
  %v408 = vsub.s32 %v405, %v407
  %v409 = vrot.slane %v401, %v408
  %v411 = vmul.f32 %v367, %v409
  %v412 = vld [vmem:[%s5] sm:$0xff]
  %v413 = vmul.f32 %v412, %v412
  %v415 = vcombine.high %v413, %v413
  %v417 = vunpack.c.l.s4 1983009808
  %v418 = vunpack.c.0.s8 %v417
  %v419 = vlaneseq
  %v420 = vshrl.u32 %v419, 7
  %v421 = vsub.s32 %v418, %v420
  %v422 = vrot.slane %v413, %v421
  %v424 = vunpack.c.l.s4 1983009808
  %v425 = vunpack.c.0.s8 %v424
  %v426 = vlaneseq
  %v427 = vshrl.u32 %v426, 7
  %v428 = vsub.s32 %v425, %v427
  %v429 = vrot.slane %v415, %v428
  %v430 = vcombine.high %v422, %v422
  %v431 = vcombine.high %v429, %v429
  %v436 = vsel %vm208, %v422, 0.0
  %v437 = vsel %vm208, %v430, 0.0
  %v438 = vadd.f32 %v436, %v437
  %v439 = vsel %vm208, %v429, 0.0
  %v440 = vadd.f32 %v438, %v439
  %v441 = vsel %vm208, %v431, 0.0
  %v442 = vadd.f32 %v440, %v441
  %443 = vadd.xlane.f32.xlu0 %v442
  %v444 = vpop.xlane.xlu0 %443
  %v445 = vmax.f32 %v444, 1e-24
  %v446 = vrsqrt.pop %v445
  %v449 = vunpack.c.l.s4 269488144
  %v450 = vunpack.c.0.s8 %v449
  %v451 = vlaneseq
  %v452 = vshrl.u32 %v451, 7
  %v453 = vsub.s32 %v450, %v452
  %v454 = vrot.slane %v446, %v453
  %v456 = vmul.f32 %v412, %v454
  %v461 = vcombine.low %v363, %v364
  %v462 = vcombine.low %v365, %v366
  %v464 = vunpack.c.l.s4 1983009808
  %v465 = vunpack.c.0.s8 %v464
  %v466 = vlaneseq
  %v467 = vshrl.u32 %v466, 7
  %v468 = vsub.s32 %v465, %v467
  %v469 = vrot.slane %v461, %v468
  %v471 = vunpack.c.l.s4 1983009808
  %v472 = vunpack.c.0.s8 %v471
  %v473 = vlaneseq
  %v474 = vshrl.u32 %v473, 7
  %v475 = vsub.s32 %v472, %v474
  %v476 = vrot.slane %v462, %v475
  %v477 = vcombine.low %v469, %v476
  %v479 = vadd.f32 %v347, %v477
  %v480 = vsub.f32 %v479, %v411
  %v481 = vand.u32 2147483647, %v480
  %v483 = vcombine.high %v481, %v481
  %v485 = vunpack.c.l.s4 1983009808
  %v486 = vunpack.c.0.s8 %v485
  %v487 = vlaneseq
  %v488 = vshrl.u32 %v487, 7
  %v489 = vsub.s32 %v486, %v488
  %v490 = vrot.slane %v481, %v489
  %v492 = vunpack.c.l.s4 1983009808
  %v493 = vunpack.c.0.s8 %v492
  %v494 = vlaneseq
  %v495 = vshrl.u32 %v494, 7
  %v496 = vsub.s32 %v493, %v495
  %v497 = vrot.slane %v483, %v496
  %v498 = vcombine.high %v490, %v490
  %v499 = vcombine.high %v497, %v497
  %v504 = vsel %vm208, %v490, 0.0
  %v505 = vsel %vm208, %v498, 0.0
  %v506 = vadd.f32 %v504, %v505
  %v507 = vsel %vm208, %v497, 0.0
  %v508 = vadd.f32 %v506, %v507
  %v509 = vsel %vm208, %v499, 0.0
  %v510 = vadd.f32 %v508, %v509
  %511 = vadd.xlane.f32.xlu0 %v510
  %v512 = vpop.xlane.xlu0 %511
  %v513 = vsub.f32 %v479, %v456
  %v514 = vand.u32 2147483647, %v513
  %v516 = vcombine.high %v514, %v514
  %v518 = vunpack.c.l.s4 1983009808
  %v519 = vunpack.c.0.s8 %v518
  %v520 = vlaneseq
  %v521 = vshrl.u32 %v520, 7
  %v522 = vsub.s32 %v519, %v521
  %v523 = vrot.slane %v514, %v522
  %v525 = vunpack.c.l.s4 1983009808
  %v526 = vunpack.c.0.s8 %v525
  %v527 = vlaneseq
  %v528 = vshrl.u32 %v527, 7
  %v529 = vsub.s32 %v526, %v528
  %v530 = vrot.slane %v516, %v529
  %v531 = vcombine.high %v523, %v523
  %v532 = vcombine.high %v530, %v530
  %v537 = vsel %vm208, %v523, 0.0
  %v538 = vsel %vm208, %v531, 0.0
  %v539 = vadd.f32 %v537, %v538
  %v540 = vsel %vm208, %v530, 0.0
  %v541 = vadd.f32 %v539, %v540
  %v542 = vsel %vm208, %v532, 0.0
  %v543 = vadd.f32 %v541, %v542
  %544 = vadd.xlane.f32.xlu0 %v543
  %v545 = vpop.xlane.xlu0 %544
  %v546 = vsub.f32 %v512, %v545
  %v547 = vadd.f32 %v546, 1.0
  %v548 = vmax.f32 %v547, 0.0
  %vm549 = vcmask 1024
  %550 = vst.msk [vmem:[%s6] sm:$0x3] %vm549, %v512
  %vm551 = vcmask 9224
  %552 = vst.msk [vmem:[%s6] sm:$0x3] %vm551, %v545
  %vm553 = vcmask 17424
  %554 = vst.msk [vmem:[%s6] sm:$0x3] %vm553, %v548
  // Predicated region
  $region26: #{align_forward.7} parent=0 // pred_check
    _
  $region27: #{align_forward.7} parent=0 // pred_check_branch
    %556 = sbr.rel (0) target = $region29
  $region28: #{align_forward.7} parent=0 // pred_region
    _
  $region29: #{align_forward.7} parent=0 // pred_fallthru
    _
  // Predicated region
  $region30: #{align_forward.7} parent=0 // pred_check
    _
  $region31: #{align_forward.7} parent=0 // pred_check_branch
    %558 = sbr.rel (0) target = $region33
  $region32: #{align_forward.7} parent=0 // pred_region
    _
  $region33: #{align_forward.7} parent=0 // pred_fallthru
    _

// kernel: align_forward.6
$region0: #{align_forward.6}
  #allocation0 [shape = 'u32[]', space=smem, size = 0x4, offset = 0x4, fixed_abs, tag = 'smem constant byte address 0x4 - core index']
  #allocation1 [shape = 'u32[144,128]{1,0:T(1,128)}', space=vmem, size = 0x12000, scoped, tag = 'internal scratch']
  #allocation2 [shape = 'f32[2,1]{1,0:T(2,128)}', space=vmem, size = 0x400, scoped, tag = 'scratch operand']
  #allocation3 [shape = 'f32[2,1]{1,0:T(2,128)}', space=vmem, size = 0x400, scoped, tag = 'scratch operand']
  #allocation4 [shape = 'f32[2,1]{1,0:T(2,128)}', space=vmem, size = 0x400, scoped, tag = 'scratch operand']
  #allocation5 [shape = 'f32[1,1]{1,0:T(1,128)}', space=vmem, size = 0x200, scoped, tag = 'scratch operand']
  #allocation6 [shape = 'f32[1]{0:T(128)S(6)}', space=smem, size = 0x200, scoped, tag = 'scoped memory for align_forward.6']
  %s0 = inlined_call_operand.vmem [shape: f32[2,512], index: 0, kind: input, shape index: {}]
  %s1 = inlined_call_operand.vmem [shape: f32[2,512], index: 1, kind: input, shape index: {}]
  %s2 = inlined_call_operand.<no memory space> [shape: f32[1], index: 2, kind: input, shape index: {}]
  %s3 = inlined_call_operand.hbm [shape: f32[1,1], index: 3, kind: output, shape index: {}]
  %s4 = sld [smem:[#allocation0]]
  $region30: #{align_forward.6} parent=0
    _
  %s6 = ssub.s32 1, %s4
  %s7 = scalar_select 0, %s6, %s4
  %8 = sst [smem:[#allocation6]] %s2
  $region1: #{align_forward.6} parent=0
    #allocation7 [shape = 'u8[512]{0}', space=vmem, size = 0x400, scoped, tag = 'output window, operand 0, single buffered']
    #allocation8 [shape = 's32[1]{0}', space=sflag, size = 0x4, scoped, tag = 'scoped memory for align_forward.6']
    %9 = vsyncpa [#allocation8], 0
    // Predicated region
    $region2: #{align_forward.6} parent=1 // pred_check
      _
    $region3: #{align_forward.6} parent=1 // pred_check_branch
      %11 = sbr.rel (0) target = $region5
    $region4: #{align_forward.6} parent=1 // pred_region
      _
    $region5: #{align_forward.6} parent=1 // pred_fallthru
      _
    // Predicated region
    $region6: #{align_forward.6} parent=1 // pred_check
      _
    $region7: #{align_forward.6} parent=1 // pred_check_branch
      %13 = sbr.rel (0) target = $region9
    $region8: #{align_forward.6} parent=1 // pred_region
      _
    $region9: #{align_forward.6} parent=1 // pred_fallthru
      _
    // Predicated region
    $region10: #{align_forward.6} parent=1 // pred_check
      _
    $region11: #{align_forward.6} parent=1 // pred_check_branch
      %15 = sbr.rel (0) target = $region13
    $region12: #{align_forward.6} parent=1 // pred_region
      _
    $region13: #{align_forward.6} parent=1 // pred_fallthru
      _
    %p17 = scmp.eq.s32.totalorder 0, 0
    // Predicated region
    $region14: #{align_forward.6} parent=1 // pred_check
      %p18 = pneg %p17
    $region15: #{align_forward.6} parent=1 // pred_check_branch
      %20 = sbr.rel (%p18) target = $region17
    $region16: #{align_forward.6} parent=1 // pred_region
      %vm21 = vcmask 1024
      %22 = vst.msk [vmem:[#allocation2] sm:$0x3] %vm21, -inf
      %23 = vst.msk [vmem:[#allocation3] sm:$0x3] %vm21, 0.0
      %24 = vst.msk [vmem:[#allocation4] sm:$0x3] %vm21, 0.0
      %vm25 = vcmask 0
      %26 = vst.msk [vmem:[#allocation5] sm:$0x1] %vm25, 0.0
    $region17: #{align_forward.6} parent=1 // pred_fallthru
      _
    %v27 = vld [vmem:[%s0] sm:$0xff]
    %v29 = vcombine.high %v27, %v27
    %v31 = vunpack.c.l.s4 1983009808
    %v32 = vunpack.c.0.s8 %v31
    %v33 = vlaneseq
    %v34 = vshrl.u32 %v33, 7
    %v35 = vsub.s32 %v32, %v34
    %v36 = vrot.slane %v27, %v35
    %v38 = vunpack.c.l.s4 1983009808
    %v39 = vunpack.c.0.s8 %v38
    %v40 = vlaneseq
    %v41 = vshrl.u32 %v40, 7
    %v42 = vsub.s32 %v39, %v41
    %v43 = vrot.slane %v29, %v42
    %v44 = vcombine.high %v36, %v36
    %v45 = vcombine.high %v43, %v43
    %v50 = vpack.c.bf16 %v36, %v36
    %v51 = vpack.c.bf16 %v44, %v44
    %v52 = vpack.c.bf16 %v43, %v43
    %v53 = vpack.c.bf16 %v45, %v45
    %v54 = vld [vmem:[%s1] sm:$0xff]
    %v56 = vcombine.high %v54, %v54
    %v58 = vunpack.c.l.s4 1983009808
    %v59 = vunpack.c.0.s8 %v58
    %v60 = vlaneseq
    %v61 = vshrl.u32 %v60, 7
    %v62 = vsub.s32 %v59, %v61
    %v63 = vrot.slane %v54, %v62
    %v65 = vunpack.c.l.s4 1983009808
    %v66 = vunpack.c.0.s8 %v65
    %v67 = vlaneseq
    %v68 = vshrl.u32 %v67, 7
    %v69 = vsub.s32 %v66, %v68
    %v70 = vrot.slane %v56, %v69
    %v71 = vcombine.high %v63, %v63
    %v72 = vcombine.high %v70, %v70
    %v77 = vpack.c.bf16 %v63, %v63
    %v78 = vpack.c.bf16 %v71, %v71
    %v79 = vpack.c.bf16 %v70, %v70
    %v80 = vpack.c.bf16 %v72, %v72
    %s81 = sld [smem:[#allocation6]]
    %82 = vmatprep.subr.bf16.mxu0 0
    %83 = vmatpush1.bf16.xpose.msra.mxu0 0
    %84 = vmatprep.subr.bf16.mxu0 0
    %85 = vmatpush1.bf16.xpose.msra.mxu0 0
    %86 = vmatprep.subr.bf16.mxu0 0
    %87 = vmatpush1.bf16.xpose.msra.mxu0 0
    %88 = vmatprep.subr.bf16.mxu0 0
    %89 = vmatpush1.bf16.xpose.msra.mxu0 0
    %90 = vmatprep.subr.bf16.mxu0 0
    %91 = vmatpush1.bf16.xpose.msra.mxu0 0
    %92 = vmatprep.subr.bf16.mxu0 0
    %93 = vmatpush1.bf16.xpose.msra.mxu0 0
    %94 = vmatprep.subr.bf16.mxu0 0
    %95 = vmatpush1.bf16.xpose.msra.mxu0 0
    %96 = vmatprep.subr.bf16.mxu0 %v78
    %97 = vmatpush1.bf16.xpose.msra.mxu0 %v77
    %98 = vmatprep.subr.bf16.mxu0 0
    %99 = vmatpush2.bf16.xpose.msra.mxu0 0
    %100 = vmatprep.subr.bf16.mxu0 0
    %101 = vmatpush2.bf16.xpose.msra.mxu0 0
    %102 = vmatprep.subr.bf16.mxu0 0
    %103 = vmatpush2.bf16.xpose.msra.mxu0 0
    %104 = vmatprep.subr.bf16.mxu0 0
    %105 = vmatpush2.bf16.xpose.msra.mxu0 0
    %106 = vmatprep.subr.bf16.mxu0 0
    %107 = vmatpush2.bf16.xpose.msra.mxu0 0
    %108 = vmatprep.subr.bf16.mxu0 0
    %109 = vmatpush2.bf16.xpose.msra.mxu0 0
    %110 = vmatprep.subr.bf16.mxu0 0
    %111 = vmatpush2.bf16.xpose.msra.mxu0 0
    %112 = vmatprep.subr.bf16.mxu0 0
    %113 = vmatpush2.bf16.xpose.msra.mxu0 0
    %114 = vmatprep.mubr.bf16.mxu0 %v51
    %115 = vmatmul.mubr.bf16.gmra.mxu0 %v50
    %v116 = vpop.f32.mrf.mxu0
    %v117 = vadd.f32 0.0, %v116
    %v118 = vpop.f32.mrf.mxu0
    %v119 = vpop.f32.mrf.mxu0
    %v120 = vpop.f32.mrf.mxu0
    %121 = vdwg.mxu0
    %122 = vmatprep.subr.bf16.mxu0 0
    %123 = vmatpush1.bf16.xpose.msra.mxu0 0
    %124 = vmatprep.subr.bf16.mxu0 0
    %125 = vmatpush1.bf16.xpose.msra.mxu0 0
    %126 = vmatprep.subr.bf16.mxu0 0
    %127 = vmatpush1.bf16.xpose.msra.mxu0 0
    %128 = vmatprep.subr.bf16.mxu0 0
    %129 = vmatpush1.bf16.xpose.msra.mxu0 0
    %130 = vmatprep.subr.bf16.mxu0 0
    %131 = vmatpush1.bf16.xpose.msra.mxu0 0
    %132 = vmatprep.subr.bf16.mxu0 0
    %133 = vmatpush1.bf16.xpose.msra.mxu0 0
    %134 = vmatprep.subr.bf16.mxu0 0
    %135 = vmatpush1.bf16.xpose.msra.mxu0 0
    %136 = vmatprep.subr.bf16.mxu0 %v80
    %137 = vmatpush1.bf16.xpose.msra.mxu0 %v79
    %138 = vmatprep.subr.bf16.mxu0 0
    %139 = vmatpush2.bf16.xpose.msra.mxu0 0
    %140 = vmatprep.subr.bf16.mxu0 0
    %141 = vmatpush2.bf16.xpose.msra.mxu0 0
    %142 = vmatprep.subr.bf16.mxu0 0
    %143 = vmatpush2.bf16.xpose.msra.mxu0 0
    %144 = vmatprep.subr.bf16.mxu0 0
    %145 = vmatpush2.bf16.xpose.msra.mxu0 0
    %146 = vmatprep.subr.bf16.mxu0 0
    %147 = vmatpush2.bf16.xpose.msra.mxu0 0
    %148 = vmatprep.subr.bf16.mxu0 0
    %149 = vmatpush2.bf16.xpose.msra.mxu0 0
    %150 = vmatprep.subr.bf16.mxu0 0
    %151 = vmatpush2.bf16.xpose.msra.mxu0 0
    %152 = vmatprep.subr.bf16.mxu0 0
    %153 = vmatpush2.bf16.xpose.msra.mxu0 0
    %154 = vmatprep.mubr.bf16.mxu0 %v53
    %155 = vmatmul.mubr.bf16.gmra.mxu0 %v52
    %v156 = vpop.f32.mrf.mxu0
    %v157 = vadd.f32 %v117, %v156
    %v158 = vpop.f32.mrf.mxu0
    %v159 = vpop.f32.mrf.mxu0
    %v160 = vpop.f32.mrf.mxu0
    %161 = vdwg.mxu0
    %v162 = vstv %s81
    %v163 = vmul.f32 %v157, %v162
    %v164 = vlaneseq
    %v165 = vshrl.u32 %v164, 7
    %v166 = vlaneseq
    %v167 = vand.u32 %v166, 127
    %s168 = smul.u32 0, 2
    %v169 = vstv %s168
    %v170 = vadd.s32 %v167, %v169
    %vm171 = vcmp.eq.s32.totalorder %v165, %v170
    %v172 = vld [vmem:[#allocation2] sm:$0x3]
    %vm173 = vcmask 9216
    %v174 = vsel %vm173, %v163, -inf
    %175 = vmax.xlane.f32.xlu0 %v174
    %v176 = vpop.xlane.xlu0 %175
    %v177 = vmax.f32 %v172, %v176
    %v178 = vsub.f32 %v172, %v177
    %v179 = vmul.f32 %v178, 1.442695
    %v180 = vpow.pop %v179
    %v181 = vld [vmem:[#allocation3] sm:$0x3]
    %v182 = vmul.f32 %v180, %v181
    %184 = vset.pattern.permute.xlu0 0
    %185 = vperm.xlu0 %184, %v177
    %v186 = vpop.permute.xlu0 %185
    %v188 = vsub.f32 %v163, %v186
    %v189 = vmul.f32 %v188, 1.442695
    %v190 = vpow.pop %v189
    %v191 = vsel %vm173, %v190, 0.0
    %192 = vadd.xlane.f32.xlu0 %v191
    %v193 = vpop.xlane.xlu0 %192
    %v194 = vadd.f32 %v182, %v193
    %vm195 = vcmask 1024
    %196 = vst.msk [vmem:[#allocation3] sm:$0x3] %vm195, %v194
    %197 = vst.msk [vmem:[#allocation2] sm:$0x3] %vm195, %v177
    %v198 = vld [vmem:[#allocation4] sm:$0x3]
    %v199 = vsel %vm171, %v163, 0.0
    %v200 = vsel %vm173, %v199, 0.0
    %201 = vadd.xlane.f32.xlu0 %v200
    %v202 = vpop.xlane.xlu0 %201
    %v203 = vadd.f32 %v198, %v202
    %204 = vst.msk [vmem:[#allocation4] sm:$0x3] %vm195, %v203
    %v205 = vrot.slane %v174, 4
    %v206 = vmax.f32 %v174, %v205
    %v207 = vrot.slane %v206, 2
    %v208 = vmax.f32 %v206, %v207
    %v209 = vrot.slane %v208, 1
    %v210 = vmax.f32 %v208, %v209
    %v211 = vsub.f32 %v163, %v210
    %v212 = vmul.f32 %v211, 1.442695
    %v213 = vpow.pop %v212
    %v214 = vsel %vm173, %v213, 0.0
    %v215 = vrot.slane %v214, 4
    %v216 = vadd.f32 %v214, %v215
    %v217 = vrot.slane %v216, 2
    %v218 = vadd.f32 %v216, %v217
    %v219 = vrot.slane %v218, 1
    %v220 = vadd.f32 %v218, %v219
    %v221 = vlog2.pop %v220
    %v222 = vmul.f32 %v221, 0.6931472
    %v223 = vadd.f32 %v222, %v210
    %v224 = vrot.slane %v200, 4
    %v225 = vadd.f32 %v200, %v224
    %v226 = vrot.slane %v225, 2
    %v227 = vadd.f32 %v225, %v226
    %v228 = vrot.slane %v227, 1
    %v229 = vadd.f32 %v227, %v228
    %v230 = vsub.f32 %v223, %v229
    %vm231 = vcmask 15360
    %v232 = vsel %vm231, %v230, 0.0
    %233 = vadd.xlane.f32.xlu0 %v232
    %v234 = vpop.xlane.xlu0 %233
    %v235 = vld [vmem:[#allocation5] sm:$0x1]
    %v236 = vadd.f32 %v235, %v234
    %vm237 = vcmask 0
    %238 = vst.msk [vmem:[#allocation5] sm:$0x1] %vm237, %v236
    // Predicated region
    $region18: #{align_forward.6} parent=1 // pred_check
      %p239 = pneg %p17
    $region19: #{align_forward.6} parent=1 // pred_check_branch
      %241 = sbr.rel (%p239) target = $region21
    $region20: #{align_forward.6} parent=1 // pred_region
      %v242 = vld [vmem:[#allocation2] sm:$0x3]
      %v243 = vld [vmem:[#allocation3] sm:$0x3]
      %v244 = vlog2.pop %v243
      %v245 = vmul.f32 %v244, 0.6931472
      %v246 = vadd.f32 %v242, %v245
      %v247 = vld [vmem:[#allocation4] sm:$0x3]
      %v248 = vsub.f32 %v246, %v247
      %v249 = vsel %vm195, %v248, 0.0
      %v250 = vrot.slane %v249, 4
      %v251 = vadd.f32 %v249, %v250
      %v252 = vrot.slane %v251, 2
      %v253 = vadd.f32 %v251, %v252
      %v254 = vrot.slane %v253, 1
      %v255 = vadd.f32 %v253, %v254
      %v256 = vld [vmem:[#allocation5] sm:$0x1]
      %v257 = vadd.f32 %v255, %v256
      %v258 = vmul.f32 %v257, 0.25
      %259 = vst.msk [vmem:[#allocation7] sm:$0x1] %vm237, %v258
    $region21: #{align_forward.6} parent=1 // pred_fallthru
      _
    // Predicated region
    $region22: #{align_forward.6} parent=1 // pred_check
      _
    $region23: #{align_forward.6} parent=1 // pred_check_branch
      %261 = sbr.rel (0) target = $region25
    $region24: #{align_forward.6} parent=1 // pred_region
      %s263 = ssub.s32 16, 16
      %264 = vsyncadd [#allocation8], %s263
      %s266 = sshll.u32 [#allocation7], 4
      %s267 = int_to_ptr.vmem [resolvable:$true] %s266
      %269 = dma.vmem_to_hbm [thread:$0]  %s267, 16, %s3, [#allocation8]
    $region25: #{align_forward.6} parent=1 // pred_fallthru
      _
    // Predicated region
    $region26: #{align_forward.6} parent=1 // pred_check
      _
    $region27: #{align_forward.6} parent=1 // pred_check_branch
      %271 = sbr.rel (0) target = $region29
    $region28: #{align_forward.6} parent=1 // pred_region
      %272 = dma.done [#allocation8], 16
    $region29: #{align_forward.6} parent=1 // pred_fallthru
      _
    %273 = vsyncpa [#allocation8], 1

// kernel: align_forward.4
$region0: #{align_forward.4}
  #allocation0 [shape = 'u32[]', space=smem, size = 0x4, offset = 0x4, fixed_abs, tag = 'smem constant byte address 0x4 - core index']
  #allocation1 [shape = 'u32[144,128]{1,0:T(1,128)}', space=vmem, size = 0x12000, scoped, tag = 'internal scratch']
  %s0 = inlined_call_operand.vmem [shape: f32[6,4], index: 0, kind: input, shape index: {}]
  %s1 = inlined_call_operand.vmem [shape: bf16[4,512], index: 1, kind: input, shape index: {}]
  %s2 = inlined_call_operand.vmem [shape: f32[1,512], index: 2, kind: input, shape index: {}]
  %s3 = inlined_call_operand.vmem [shape: bf16[512,512], index: 3, kind: input, shape index: {}]
  %s4 = inlined_call_operand.vmem [shape: f32[1,512], index: 4, kind: input, shape index: {}]
  %s5 = inlined_call_operand.vmem [shape: f32[6,512], index: 5, kind: output, shape index: {}]
  %s6 = sld [smem:[#allocation0]]
  $region30: #{align_forward.4} parent=0
    _
  %s8 = ssub.s32 1, %s6
  %s9 = scalar_select 0, %s8, %s6
  // Predicated region
  $region2: #{align_forward.4} parent=0 // pred_check
    _
  $region3: #{align_forward.4} parent=0 // pred_check_branch
    %11 = sbr.rel (0) target = $region5
  $region4: #{align_forward.4} parent=0 // pred_region
    _
  $region5: #{align_forward.4} parent=0 // pred_fallthru
    _
  // Predicated region
  $region6: #{align_forward.4} parent=0 // pred_check
    _
  $region7: #{align_forward.4} parent=0 // pred_check_branch
    %13 = sbr.rel (0) target = $region9
  $region8: #{align_forward.4} parent=0 // pred_region
    _
  $region9: #{align_forward.4} parent=0 // pred_fallthru
    _
  // Predicated region
  $region10: #{align_forward.4} parent=0 // pred_check
    _
  $region11: #{align_forward.4} parent=0 // pred_check_branch
    %15 = sbr.rel (0) target = $region13
  $region12: #{align_forward.4} parent=0 // pred_region
    _
  $region13: #{align_forward.4} parent=0 // pred_fallthru
    _
  // Predicated region
  $region14: #{align_forward.4} parent=0 // pred_check
    _
  $region15: #{align_forward.4} parent=0 // pred_check_branch
    %17 = sbr.rel (0) target = $region17
  $region16: #{align_forward.4} parent=0 // pred_region
    _
  $region17: #{align_forward.4} parent=0 // pred_fallthru
    _
  // Predicated region
  $region18: #{align_forward.4} parent=0 // pred_check
    _
  $region19: #{align_forward.4} parent=0 // pred_check_branch
    %19 = sbr.rel (0) target = $region21
  $region20: #{align_forward.4} parent=0 // pred_region
    _
  $region21: #{align_forward.4} parent=0 // pred_fallthru
    _
  %v21 = vld [vmem:[%s0] sm:$0x3f]
  %v22 = vpack.c.bf16 %v21, %v21
  %v23 = vld [vmem:[%s1] sm:$0xff]
  %v24 = vld [vmem:[%s2] sm:$0xf]
  %v26 = vlaneseq
  %v27 = vshrl.u32 %v26, 7
  %v28 = vsub.s32 0, %v27
  %v29 = vrot.slane %v24, %v28
  %v30 = vlaneseq
  %v31 = vshrl.u32 %v30, 7
  %v32 = vsub.s32 1, %v31
  %v33 = vrot.slane %v24, %v32
  %v34 = vlaneseq
  %v35 = vshrl.u32 %v34, 7
  %v36 = vsub.s32 2, %v35
  %v37 = vrot.slane %v24, %v36
  %v38 = vlaneseq
  %v39 = vshrl.u32 %v38, 7
  %v40 = vsub.s32 3, %v39
  %v41 = vrot.slane %v24, %v40
  %v47 = vcombine.high %v23, %v23
  %v49 = vunpack.c.l.s4 1983009808
  %v50 = vunpack.c.0.s8 %v49
  %v51 = vlaneseq
  %v52 = vshrl.u32 %v51, 7
  %v53 = vsub.s32 %v50, %v52
  %v54 = vrot.slane %v23, %v53
  %v56 = vunpack.c.l.s4 1983009808
  %v57 = vunpack.c.0.s8 %v56
  %v58 = vlaneseq
  %v59 = vshrl.u32 %v58, 7
  %v60 = vsub.s32 %v57, %v59
  %v61 = vrot.slane %v47, %v60
  %v62 = vcombine.high %v54, %v54
  %v63 = vcombine.high %v61, %v61
  %vm64 = vcmask 31744
  %v66 = vsel %vm64, %v22, 0
  %vm68 = vcmask 1041408
  %v70 = vsel %vm68, %v54, 0
  %v73 = vsel %vm68, %v62, 0
  %v76 = vsel %vm68, %v61, 0
  %v79 = vsel %vm68, %v63, 0
  %81 = vmatprep.subr.bf16.mxu0 0
  %82 = vmatpush1.bf16.msra.mxu0 0
  %83 = vmatprep.subr.bf16.mxu0 0
  %84 = vmatpush1.bf16.msra.mxu0 0
  %85 = vmatprep.subr.bf16.mxu0 0
  %86 = vmatpush1.bf16.msra.mxu0 0
  %87 = vmatprep.subr.bf16.mxu0 0
  %88 = vmatpush1.bf16.msra.mxu0 0
  %89 = vmatprep.subr.bf16.mxu0 0
  %90 = vmatpush1.bf16.msra.mxu0 0
  %91 = vmatprep.subr.bf16.mxu0 0
  %92 = vmatpush1.bf16.msra.mxu0 0
  %93 = vmatprep.subr.bf16.mxu0 0
  %94 = vmatpush1.bf16.msra.mxu0 0
  %95 = vmatprep.subr.bf16.mxu0 %v73
  %96 = vmatpush1.bf16.msra.mxu0 %v70
  %97 = vmatprep.subr.bf16.mxu0 0
  %98 = vmatpush2.bf16.msra.mxu0 0
  %99 = vmatprep.subr.bf16.mxu0 0
  %100 = vmatpush2.bf16.msra.mxu0 0
  %101 = vmatprep.subr.bf16.mxu0 0
  %102 = vmatpush2.bf16.msra.mxu0 0
  %103 = vmatprep.subr.bf16.mxu0 0
  %104 = vmatpush2.bf16.msra.mxu0 0
  %105 = vmatprep.subr.bf16.mxu0 0
  %106 = vmatpush2.bf16.msra.mxu0 0
  %107 = vmatprep.subr.bf16.mxu0 0
  %108 = vmatpush2.bf16.msra.mxu0 0
  %109 = vmatprep.subr.bf16.mxu0 0
  %110 = vmatpush2.bf16.msra.mxu0 0
  %111 = vmatprep.subr.bf16.mxu0 0
  %112 = vmatpush2.bf16.msra.mxu0 0
  %113 = vmatprep.mubr.bf16.mxu0 0
  %114 = vmatmul.mubr.bf16.gmra.mxu0 %v66
  %v115 = vpop.f32.mrf.mxu0
  %v116 = vadd.f32 %v29, %v115
  %v117 = vpop.f32.mrf.mxu0
  %v118 = vadd.f32 %v33, %v117
  %v119 = vpop.f32.mrf.mxu0
  %v120 = vpop.f32.mrf.mxu0
  %121 = vdwg.mxu0
  %122 = vmatprep.subr.bf16.mxu0 0
  %123 = vmatpush1.bf16.msra.mxu0 0
  %124 = vmatprep.subr.bf16.mxu0 0
  %125 = vmatpush1.bf16.msra.mxu0 0
  %126 = vmatprep.subr.bf16.mxu0 0
  %127 = vmatpush1.bf16.msra.mxu0 0
  %128 = vmatprep.subr.bf16.mxu0 0
  %129 = vmatpush1.bf16.msra.mxu0 0
  %130 = vmatprep.subr.bf16.mxu0 0
  %131 = vmatpush1.bf16.msra.mxu0 0
  %132 = vmatprep.subr.bf16.mxu0 0
  %133 = vmatpush1.bf16.msra.mxu0 0
  %134 = vmatprep.subr.bf16.mxu0 0
  %135 = vmatpush1.bf16.msra.mxu0 0
  %136 = vmatprep.subr.bf16.mxu0 %v79
  %137 = vmatpush1.bf16.msra.mxu0 %v76
  %138 = vmatprep.subr.bf16.mxu0 0
  %139 = vmatpush2.bf16.msra.mxu0 0
  %140 = vmatprep.subr.bf16.mxu0 0
  %141 = vmatpush2.bf16.msra.mxu0 0
  %142 = vmatprep.subr.bf16.mxu0 0
  %143 = vmatpush2.bf16.msra.mxu0 0
  %144 = vmatprep.subr.bf16.mxu0 0
  %145 = vmatpush2.bf16.msra.mxu0 0
  %146 = vmatprep.subr.bf16.mxu0 0
  %147 = vmatpush2.bf16.msra.mxu0 0
  %148 = vmatprep.subr.bf16.mxu0 0
  %149 = vmatpush2.bf16.msra.mxu0 0
  %150 = vmatprep.subr.bf16.mxu0 0
  %151 = vmatpush2.bf16.msra.mxu0 0
  %152 = vmatprep.subr.bf16.mxu0 0
  %153 = vmatpush2.bf16.msra.mxu0 0
  %154 = vmatprep.mubr.bf16.mxu0 0
  %155 = vmatmul.mubr.bf16.gmra.mxu0 %v66
  %v156 = vpop.f32.mrf.mxu0
  %v157 = vadd.f32 %v37, %v156
  %v158 = vpop.f32.mrf.mxu0
  %v159 = vadd.f32 %v41, %v158
  %v160 = vpop.f32.mrf.mxu0
  %v161 = vpop.f32.mrf.mxu0
  %162 = vdwg.mxu0
  %v163 = vpack.c.bf16 %v116, %v116
  %v164 = vpack.c.bf16 %v118, %v118
  %v165 = vpack.c.bf16 %v157, %v157
  %v166 = vpack.c.bf16 %v159, %v159
  %v167 = vld [vmem:[%s3] sm:$0xff]
  %v168 = vld [vmem:[%s3 + $0x8] sm:$0xff]
  %v169 = vld [vmem:[%s3 + $0x10] sm:$0xff]
  %v170 = vld [vmem:[%s3 + $0x18] sm:$0xff]
  %v171 = vld [vmem:[%s3 + $0x20] sm:$0xff]
  %v172 = vld [vmem:[%s3 + $0x28] sm:$0xff]
  %v173 = vld [vmem:[%s3 + $0x30] sm:$0xff]
  %v174 = vld [vmem:[%s3 + $0x38] sm:$0xff]
  %v175 = vld [vmem:[%s3 + $0x40] sm:$0xff]
  %v176 = vld [vmem:[%s3 + $0x48] sm:$0xff]
  %v177 = vld [vmem:[%s3 + $0x50] sm:$0xff]
  %v178 = vld [vmem:[%s3 + $0x58] sm:$0xff]
  %v179 = vld [vmem:[%s3 + $0x60] sm:$0xff]
  %v180 = vld [vmem:[%s3 + $0x68] sm:$0xff]
  %v181 = vld [vmem:[%s3 + $0x70] sm:$0xff]
  %v182 = vld [vmem:[%s3 + $0x78] sm:$0xff]
  %v183 = vld [vmem:[%s3 + $0x80] sm:$0xff]
  %v184 = vld [vmem:[%s3 + $0x88] sm:$0xff]
  %v185 = vld [vmem:[%s3 + $0x90] sm:$0xff]
  %v186 = vld [vmem:[%s3 + $0x98] sm:$0xff]
  %v187 = vld [vmem:[%s3 + $0xa0] sm:$0xff]
  %v188 = vld [vmem:[%s3 + $0xa8] sm:$0xff]
  %v189 = vld [vmem:[%s3 + $0xb0] sm:$0xff]
  %v190 = vld [vmem:[%s3 + $0xb8] sm:$0xff]
  %v191 = vld [vmem:[%s3 + $0xc0] sm:$0xff]
  %v192 = vld [vmem:[%s3 + $0xc8] sm:$0xff]
  %v193 = vld [vmem:[%s3 + $0xd0] sm:$0xff]
  %v194 = vld [vmem:[%s3 + $0xd8] sm:$0xff]
  %v195 = vld [vmem:[%s3 + $0xe0] sm:$0xff]
  %v196 = vld [vmem:[%s3 + $0xe8] sm:$0xff]
  %v197 = vld [vmem:[%s3 + $0xf0] sm:$0xff]
  %v198 = vld [vmem:[%s3 + $0xf8] sm:$0xff]
  %v199 = vld [vmem:[%s3 + $0x100] sm:$0xff]
  %v200 = vld [vmem:[%s3 + $0x108] sm:$0xff]
  %v201 = vld [vmem:[%s3 + $0x110] sm:$0xff]
  %v202 = vld [vmem:[%s3 + $0x118] sm:$0xff]
  %v203 = vld [vmem:[%s3 + $0x120] sm:$0xff]
  %v204 = vld [vmem:[%s3 + $0x128] sm:$0xff]
  %v205 = vld [vmem:[%s3 + $0x130] sm:$0xff]
  %v206 = vld [vmem:[%s3 + $0x138] sm:$0xff]
  %v207 = vld [vmem:[%s3 + $0x140] sm:$0xff]
  %v208 = vld [vmem:[%s3 + $0x148] sm:$0xff]
  %v209 = vld [vmem:[%s3 + $0x150] sm:$0xff]
  %v210 = vld [vmem:[%s3 + $0x158] sm:$0xff]
  %v211 = vld [vmem:[%s3 + $0x160] sm:$0xff]
  %v212 = vld [vmem:[%s3 + $0x168] sm:$0xff]
  %v213 = vld [vmem:[%s3 + $0x170] sm:$0xff]
  %v214 = vld [vmem:[%s3 + $0x178] sm:$0xff]
  %v215 = vld [vmem:[%s3 + $0x180] sm:$0xff]
  %v216 = vld [vmem:[%s3 + $0x188] sm:$0xff]
  %v217 = vld [vmem:[%s3 + $0x190] sm:$0xff]
  %v218 = vld [vmem:[%s3 + $0x198] sm:$0xff]
  %v219 = vld [vmem:[%s3 + $0x1a0] sm:$0xff]
  %v220 = vld [vmem:[%s3 + $0x1a8] sm:$0xff]
  %v221 = vld [vmem:[%s3 + $0x1b0] sm:$0xff]
  %v222 = vld [vmem:[%s3 + $0x1b8] sm:$0xff]
  %v223 = vld [vmem:[%s3 + $0x1c0] sm:$0xff]
  %v224 = vld [vmem:[%s3 + $0x1c8] sm:$0xff]
  %v225 = vld [vmem:[%s3 + $0x1d0] sm:$0xff]
  %v226 = vld [vmem:[%s3 + $0x1d8] sm:$0xff]
  %v227 = vld [vmem:[%s3 + $0x1e0] sm:$0xff]
  %v228 = vld [vmem:[%s3 + $0x1e8] sm:$0xff]
  %v229 = vld [vmem:[%s3 + $0x1f0] sm:$0xff]
  %v230 = vld [vmem:[%s3 + $0x1f8] sm:$0xff]
  %v231 = vld [vmem:[%s3 + $0x200] sm:$0xff]
  %v232 = vld [vmem:[%s3 + $0x208] sm:$0xff]
  %v233 = vld [vmem:[%s3 + $0x210] sm:$0xff]
  %v234 = vld [vmem:[%s3 + $0x218] sm:$0xff]
  %v235 = vld [vmem:[%s3 + $0x220] sm:$0xff]
  %v236 = vld [vmem:[%s3 + $0x228] sm:$0xff]
  %v237 = vld [vmem:[%s3 + $0x230] sm:$0xff]
  %v238 = vld [vmem:[%s3 + $0x238] sm:$0xff]
  %v239 = vld [vmem:[%s3 + $0x240] sm:$0xff]
  %v240 = vld [vmem:[%s3 + $0x248] sm:$0xff]
  %v241 = vld [vmem:[%s3 + $0x250] sm:$0xff]
  %v242 = vld [vmem:[%s3 + $0x258] sm:$0xff]
  %v243 = vld [vmem:[%s3 + $0x260] sm:$0xff]
  %v244 = vld [vmem:[%s3 + $0x268] sm:$0xff]
  %v245 = vld [vmem:[%s3 + $0x270] sm:$0xff]
  %v246 = vld [vmem:[%s3 + $0x278] sm:$0xff]
  %v247 = vld [vmem:[%s3 + $0x280] sm:$0xff]
  %v248 = vld [vmem:[%s3 + $0x288] sm:$0xff]
  %v249 = vld [vmem:[%s3 + $0x290] sm:$0xff]
  %v250 = vld [vmem:[%s3 + $0x298] sm:$0xff]
  %v251 = vld [vmem:[%s3 + $0x2a0] sm:$0xff]
  %v252 = vld [vmem:[%s3 + $0x2a8] sm:$0xff]
  %v253 = vld [vmem:[%s3 + $0x2b0] sm:$0xff]
  %v254 = vld [vmem:[%s3 + $0x2b8] sm:$0xff]
  %v255 = vld [vmem:[%s3 + $0x2c0] sm:$0xff]
  %v256 = vld [vmem:[%s3 + $0x2c8] sm:$0xff]
  %v257 = vld [vmem:[%s3 + $0x2d0] sm:$0xff]
  %v258 = vld [vmem:[%s3 + $0x2d8] sm:$0xff]
  %v259 = vld [vmem:[%s3 + $0x2e0] sm:$0xff]
  %v260 = vld [vmem:[%s3 + $0x2e8] sm:$0xff]
  %v261 = vld [vmem:[%s3 + $0x2f0] sm:$0xff]
  %v262 = vld [vmem:[%s3 + $0x2f8] sm:$0xff]
  %v263 = vld [vmem:[%s3 + $0x300] sm:$0xff]
  %v264 = vld [vmem:[%s3 + $0x308] sm:$0xff]
  %v265 = vld [vmem:[%s3 + $0x310] sm:$0xff]
  %v266 = vld [vmem:[%s3 + $0x318] sm:$0xff]
  %v267 = vld [vmem:[%s3 + $0x320] sm:$0xff]
  %v268 = vld [vmem:[%s3 + $0x328] sm:$0xff]
  %v269 = vld [vmem:[%s3 + $0x330] sm:$0xff]
  %v270 = vld [vmem:[%s3 + $0x338] sm:$0xff]
  %v271 = vld [vmem:[%s3 + $0x340] sm:$0xff]
  %v272 = vld [vmem:[%s3 + $0x348] sm:$0xff]
  %v273 = vld [vmem:[%s3 + $0x350] sm:$0xff]
  %v274 = vld [vmem:[%s3 + $0x358] sm:$0xff]
  %v275 = vld [vmem:[%s3 + $0x360] sm:$0xff]
  %v276 = vld [vmem:[%s3 + $0x368] sm:$0xff]
  %v277 = vld [vmem:[%s3 + $0x370] sm:$0xff]
  %v278 = vld [vmem:[%s3 + $0x378] sm:$0xff]
  %v279 = vld [vmem:[%s3 + $0x380] sm:$0xff]
  %v280 = vld [vmem:[%s3 + $0x388] sm:$0xff]
  %v281 = vld [vmem:[%s3 + $0x390] sm:$0xff]
  %v282 = vld [vmem:[%s3 + $0x398] sm:$0xff]
  %v283 = vld [vmem:[%s3 + $0x3a0] sm:$0xff]
  %v284 = vld [vmem:[%s3 + $0x3a8] sm:$0xff]
  %v285 = vld [vmem:[%s3 + $0x3b0] sm:$0xff]
  %v286 = vld [vmem:[%s3 + $0x3b8] sm:$0xff]
  %v287 = vld [vmem:[%s3 + $0x3c0] sm:$0xff]
  %v288 = vld [vmem:[%s3 + $0x3c8] sm:$0xff]
  %v289 = vld [vmem:[%s3 + $0x3d0] sm:$0xff]
  %v290 = vld [vmem:[%s3 + $0x3d8] sm:$0xff]
  %v291 = vld [vmem:[%s3 + $0x3e0] sm:$0xff]
  %v292 = vld [vmem:[%s3 + $0x3e8] sm:$0xff]
  %v293 = vld [vmem:[%s3 + $0x3f0] sm:$0xff]
  %v294 = vld [vmem:[%s3 + $0x3f8] sm:$0xff]
  %v295 = vld [vmem:[%s4] sm:$0xf]
  %v297 = vlaneseq
  %v298 = vshrl.u32 %v297, 7
  %v299 = vsub.s32 0, %v298
  %v300 = vrot.slane %v295, %v299
  %v301 = vlaneseq
  %v302 = vshrl.u32 %v301, 7
  %v303 = vsub.s32 1, %v302
  %v304 = vrot.slane %v295, %v303
  %v305 = vlaneseq
  %v306 = vshrl.u32 %v305, 7
  %v307 = vsub.s32 2, %v306
  %v308 = vrot.slane %v295, %v307
  %v309 = vlaneseq
  %v310 = vshrl.u32 %v309, 7
  %v311 = vsub.s32 3, %v310
  %v312 = vrot.slane %v295, %v311
  %v445 = vunpack.c.l.b16 %v167
  %v446 = vunpack.c.h.b16 %v167
  %v447 = vunpack.c.l.b16 %v168
  %v448 = vunpack.c.h.b16 %v168
  %v449 = vunpack.c.l.b16 %v169
  %v450 = vunpack.c.h.b16 %v169
  %v451 = vunpack.c.l.b16 %v170
  %v452 = vunpack.c.h.b16 %v170
  %v453 = vunpack.c.l.b16 %v171
  %v454 = vunpack.c.h.b16 %v171
  %v455 = vunpack.c.l.b16 %v172
  %v456 = vunpack.c.h.b16 %v172
  %v457 = vunpack.c.l.b16 %v173
  %v458 = vunpack.c.h.b16 %v173
  %v459 = vunpack.c.l.b16 %v174
  %v460 = vunpack.c.h.b16 %v174
  %v461 = vunpack.c.l.b16 %v175
  %v462 = vunpack.c.h.b16 %v175
  %v463 = vunpack.c.l.b16 %v176
  %v464 = vunpack.c.h.b16 %v176
  %v465 = vunpack.c.l.b16 %v177
  %v466 = vunpack.c.h.b16 %v177
  %v467 = vunpack.c.l.b16 %v178
  %v468 = vunpack.c.h.b16 %v178
  %v469 = vunpack.c.l.b16 %v179
  %v470 = vunpack.c.h.b16 %v179
  %v471 = vunpack.c.l.b16 %v180
  %v472 = vunpack.c.h.b16 %v180
  %v473 = vunpack.c.l.b16 %v181
  %v474 = vunpack.c.h.b16 %v181
  %v475 = vunpack.c.l.b16 %v182
  %v476 = vunpack.c.h.b16 %v182
  %v477 = vunpack.c.l.b16 %v183
  %v478 = vunpack.c.h.b16 %v183
  %v479 = vunpack.c.l.b16 %v184
  %v480 = vunpack.c.h.b16 %v184
  %v481 = vunpack.c.l.b16 %v185
  %v482 = vunpack.c.h.b16 %v185
  %v483 = vunpack.c.l.b16 %v186
  %v484 = vunpack.c.h.b16 %v186
  %v485 = vunpack.c.l.b16 %v187
  %v486 = vunpack.c.h.b16 %v187
  %v487 = vunpack.c.l.b16 %v188
  %v488 = vunpack.c.h.b16 %v188
  %v489 = vunpack.c.l.b16 %v189
  %v490 = vunpack.c.h.b16 %v189
  %v491 = vunpack.c.l.b16 %v190
  %v492 = vunpack.c.h.b16 %v190
  %v493 = vunpack.c.l.b16 %v191
  %v494 = vunpack.c.h.b16 %v191
  %v495 = vunpack.c.l.b16 %v192
  %v496 = vunpack.c.h.b16 %v192
  %v497 = vunpack.c.l.b16 %v193
  %v498 = vunpack.c.h.b16 %v193
  %v499 = vunpack.c.l.b16 %v194
  %v500 = vunpack.c.h.b16 %v194
  %v501 = vunpack.c.l.b16 %v195
  %v502 = vunpack.c.h.b16 %v195
  %v503 = vunpack.c.l.b16 %v196
  %v504 = vunpack.c.h.b16 %v196
  %v505 = vunpack.c.l.b16 %v197
  %v506 = vunpack.c.h.b16 %v197
  %v507 = vunpack.c.l.b16 %v198
  %v508 = vunpack.c.h.b16 %v198
  %v509 = vunpack.c.l.b16 %v199
  %v510 = vunpack.c.h.b16 %v199
  %v511 = vunpack.c.l.b16 %v200
  %v512 = vunpack.c.h.b16 %v200
  %v513 = vunpack.c.l.b16 %v201
  %v514 = vunpack.c.h.b16 %v201
  %v515 = vunpack.c.l.b16 %v202
  %v516 = vunpack.c.h.b16 %v202
  %v517 = vunpack.c.l.b16 %v203
  %v518 = vunpack.c.h.b16 %v203
  %v519 = vunpack.c.l.b16 %v204
  %v520 = vunpack.c.h.b16 %v204
  %v521 = vunpack.c.l.b16 %v205
  %v522 = vunpack.c.h.b16 %v205
  %v523 = vunpack.c.l.b16 %v206
  %v524 = vunpack.c.h.b16 %v206
  %v525 = vunpack.c.l.b16 %v207
  %v526 = vunpack.c.h.b16 %v207
  %v527 = vunpack.c.l.b16 %v208
  %v528 = vunpack.c.h.b16 %v208
  %v529 = vunpack.c.l.b16 %v209
  %v530 = vunpack.c.h.b16 %v209
  %v531 = vunpack.c.l.b16 %v210
  %v532 = vunpack.c.h.b16 %v210
  %v533 = vunpack.c.l.b16 %v211
  %v534 = vunpack.c.h.b16 %v211
  %v535 = vunpack.c.l.b16 %v212
  %v536 = vunpack.c.h.b16 %v212
  %v537 = vunpack.c.l.b16 %v213
  %v538 = vunpack.c.h.b16 %v213
  %v539 = vunpack.c.l.b16 %v214
  %v540 = vunpack.c.h.b16 %v214
  %v541 = vunpack.c.l.b16 %v215
  %v542 = vunpack.c.h.b16 %v215
  %v543 = vunpack.c.l.b16 %v216
  %v544 = vunpack.c.h.b16 %v216
  %v545 = vunpack.c.l.b16 %v217
  %v546 = vunpack.c.h.b16 %v217
  %v547 = vunpack.c.l.b16 %v218
  %v548 = vunpack.c.h.b16 %v218
  %v549 = vunpack.c.l.b16 %v219
  %v550 = vunpack.c.h.b16 %v219
  %v551 = vunpack.c.l.b16 %v220
  %v552 = vunpack.c.h.b16 %v220
  %v553 = vunpack.c.l.b16 %v221
  %v554 = vunpack.c.h.b16 %v221
  %v555 = vunpack.c.l.b16 %v222
  %v556 = vunpack.c.h.b16 %v222
  %v557 = vunpack.c.l.b16 %v223
  %v558 = vunpack.c.h.b16 %v223
  %v559 = vunpack.c.l.b16 %v224
  %v560 = vunpack.c.h.b16 %v224
  %v561 = vunpack.c.l.b16 %v225
  %v562 = vunpack.c.h.b16 %v225
  %v563 = vunpack.c.l.b16 %v226
  %v564 = vunpack.c.h.b16 %v226
  %v565 = vunpack.c.l.b16 %v227
  %v566 = vunpack.c.h.b16 %v227
  %v567 = vunpack.c.l.b16 %v228
  %v568 = vunpack.c.h.b16 %v228
  %v569 = vunpack.c.l.b16 %v229
  %v570 = vunpack.c.h.b16 %v229
  %v571 = vunpack.c.l.b16 %v230
  %v572 = vunpack.c.h.b16 %v230
  %v573 = vunpack.c.l.b16 %v231
  %v574 = vunpack.c.h.b16 %v231
  %v575 = vunpack.c.l.b16 %v232
  %v576 = vunpack.c.h.b16 %v232
  %v577 = vunpack.c.l.b16 %v233
  %v578 = vunpack.c.h.b16 %v233
  %v579 = vunpack.c.l.b16 %v234
  %v580 = vunpack.c.h.b16 %v234
  %v581 = vunpack.c.l.b16 %v235
  %v582 = vunpack.c.h.b16 %v235
  %v583 = vunpack.c.l.b16 %v236
  %v584 = vunpack.c.h.b16 %v236
  %v585 = vunpack.c.l.b16 %v237
  %v586 = vunpack.c.h.b16 %v237
  %v587 = vunpack.c.l.b16 %v238
  %v588 = vunpack.c.h.b16 %v238
  %v589 = vunpack.c.l.b16 %v239
  %v590 = vunpack.c.h.b16 %v239
  %v591 = vunpack.c.l.b16 %v240
  %v592 = vunpack.c.h.b16 %v240
  %v593 = vunpack.c.l.b16 %v241
  %v594 = vunpack.c.h.b16 %v241
  %v595 = vunpack.c.l.b16 %v242
  %v596 = vunpack.c.h.b16 %v242
  %v597 = vunpack.c.l.b16 %v243
  %v598 = vunpack.c.h.b16 %v243
  %v599 = vunpack.c.l.b16 %v244
  %v600 = vunpack.c.h.b16 %v244
  %v601 = vunpack.c.l.b16 %v245
  %v602 = vunpack.c.h.b16 %v245
  %v603 = vunpack.c.l.b16 %v246
  %v604 = vunpack.c.h.b16 %v246
  %v605 = vunpack.c.l.b16 %v247
  %v606 = vunpack.c.h.b16 %v247
  %v607 = vunpack.c.l.b16 %v248
  %v608 = vunpack.c.h.b16 %v248
  %v609 = vunpack.c.l.b16 %v249
  %v610 = vunpack.c.h.b16 %v249
  %v611 = vunpack.c.l.b16 %v250
  %v612 = vunpack.c.h.b16 %v250
  %v613 = vunpack.c.l.b16 %v251
  %v614 = vunpack.c.h.b16 %v251
  %v615 = vunpack.c.l.b16 %v252
  %v616 = vunpack.c.h.b16 %v252
  %v617 = vunpack.c.l.b16 %v253
  %v618 = vunpack.c.h.b16 %v253
  %v619 = vunpack.c.l.b16 %v254
  %v620 = vunpack.c.h.b16 %v254
  %v621 = vunpack.c.l.b16 %v255
  %v622 = vunpack.c.h.b16 %v255
  %v623 = vunpack.c.l.b16 %v256
  %v624 = vunpack.c.h.b16 %v256
  %v625 = vunpack.c.l.b16 %v257
  %v626 = vunpack.c.h.b16 %v257
  %v627 = vunpack.c.l.b16 %v258
  %v628 = vunpack.c.h.b16 %v258
  %v629 = vunpack.c.l.b16 %v259
  %v630 = vunpack.c.h.b16 %v259
  %v631 = vunpack.c.l.b16 %v260
  %v632 = vunpack.c.h.b16 %v260
  %v633 = vunpack.c.l.b16 %v261
  %v634 = vunpack.c.h.b16 %v261
  %v635 = vunpack.c.l.b16 %v262
  %v636 = vunpack.c.h.b16 %v262
  %v637 = vunpack.c.l.b16 %v263
  %v638 = vunpack.c.h.b16 %v263
  %v639 = vunpack.c.l.b16 %v264
  %v640 = vunpack.c.h.b16 %v264
  %v641 = vunpack.c.l.b16 %v265
  %v642 = vunpack.c.h.b16 %v265
  %v643 = vunpack.c.l.b16 %v266
  %v644 = vunpack.c.h.b16 %v266
  %v645 = vunpack.c.l.b16 %v267
  %v646 = vunpack.c.h.b16 %v267
  %v647 = vunpack.c.l.b16 %v268
  %v648 = vunpack.c.h.b16 %v268
  %v649 = vunpack.c.l.b16 %v269
  %v650 = vunpack.c.h.b16 %v269
  %v651 = vunpack.c.l.b16 %v270
  %v652 = vunpack.c.h.b16 %v270
  %v653 = vunpack.c.l.b16 %v271
  %v654 = vunpack.c.h.b16 %v271
  %v655 = vunpack.c.l.b16 %v272
  %v656 = vunpack.c.h.b16 %v272
  %v657 = vunpack.c.l.b16 %v273
  %v658 = vunpack.c.h.b16 %v273
  %v659 = vunpack.c.l.b16 %v274
  %v660 = vunpack.c.h.b16 %v274
  %v661 = vunpack.c.l.b16 %v275
  %v662 = vunpack.c.h.b16 %v275
  %v663 = vunpack.c.l.b16 %v276
  %v664 = vunpack.c.h.b16 %v276
  %v665 = vunpack.c.l.b16 %v277
  %v666 = vunpack.c.h.b16 %v277
  %v667 = vunpack.c.l.b16 %v278
  %v668 = vunpack.c.h.b16 %v278
  %v669 = vunpack.c.l.b16 %v279
  %v670 = vunpack.c.h.b16 %v279
  %v671 = vunpack.c.l.b16 %v280
  %v672 = vunpack.c.h.b16 %v280
  %v673 = vunpack.c.l.b16 %v281
  %v674 = vunpack.c.h.b16 %v281
  %v675 = vunpack.c.l.b16 %v282
  %v676 = vunpack.c.h.b16 %v282
  %v677 = vunpack.c.l.b16 %v283
  %v678 = vunpack.c.h.b16 %v283
  %v679 = vunpack.c.l.b16 %v284
  %v680 = vunpack.c.h.b16 %v284
  %v681 = vunpack.c.l.b16 %v285
  %v682 = vunpack.c.h.b16 %v285
  %v683 = vunpack.c.l.b16 %v286
  %v684 = vunpack.c.h.b16 %v286
  %v685 = vunpack.c.l.b16 %v287
  %v686 = vunpack.c.h.b16 %v287
  %v687 = vunpack.c.l.b16 %v288
  %v688 = vunpack.c.h.b16 %v288
  %v689 = vunpack.c.l.b16 %v289
  %v690 = vunpack.c.h.b16 %v289
  %v691 = vunpack.c.l.b16 %v290
  %v692 = vunpack.c.h.b16 %v290
  %v693 = vunpack.c.l.b16 %v291
  %v694 = vunpack.c.h.b16 %v291
  %v695 = vunpack.c.l.b16 %v292
  %v696 = vunpack.c.h.b16 %v292
  %v697 = vunpack.c.l.b16 %v293
  %v698 = vunpack.c.h.b16 %v293
  %v699 = vunpack.c.l.b16 %v294
  %v700 = vunpack.c.h.b16 %v294
  %v701 = vpack.c.b16 %v449, %v445
  %v702 = vpack.c.b16 %v450, %v446
  %v703 = vpack.c.b16 %v451, %v447
  %v704 = vpack.c.b16 %v452, %v448
  %v705 = vpack.c.b16 %v457, %v453
  %v706 = vpack.c.b16 %v458, %v454
  %v707 = vpack.c.b16 %v459, %v455
  %v708 = vpack.c.b16 %v460, %v456
  %v709 = vpack.c.b16 %v465, %v461
  %v710 = vpack.c.b16 %v466, %v462
  %v711 = vpack.c.b16 %v467, %v463
  %v712 = vpack.c.b16 %v468, %v464
  %v713 = vpack.c.b16 %v473, %v469
  %v714 = vpack.c.b16 %v474, %v470
  %v715 = vpack.c.b16 %v475, %v471
  %v716 = vpack.c.b16 %v476, %v472
  %v717 = vpack.c.b16 %v481, %v477
  %v718 = vpack.c.b16 %v482, %v478
  %v719 = vpack.c.b16 %v483, %v479
  %v720 = vpack.c.b16 %v484, %v480
  %v721 = vpack.c.b16 %v489, %v485
  %v722 = vpack.c.b16 %v490, %v486
  %v723 = vpack.c.b16 %v491, %v487
  %v724 = vpack.c.b16 %v492, %v488
  %v725 = vpack.c.b16 %v497, %v493
  %v726 = vpack.c.b16 %v498, %v494
  %v727 = vpack.c.b16 %v499, %v495
  %v728 = vpack.c.b16 %v500, %v496
  %v729 = vpack.c.b16 %v505, %v501
  %v730 = vpack.c.b16 %v506, %v502
  %v731 = vpack.c.b16 %v507, %v503
  %v732 = vpack.c.b16 %v508, %v504
  %v733 = vpack.c.b16 %v513, %v509
  %v734 = vpack.c.b16 %v514, %v510
  %v735 = vpack.c.b16 %v515, %v511
  %v736 = vpack.c.b16 %v516, %v512
  %v737 = vpack.c.b16 %v521, %v517
  %v738 = vpack.c.b16 %v522, %v518
  %v739 = vpack.c.b16 %v523, %v519
  %v740 = vpack.c.b16 %v524, %v520
  %v741 = vpack.c.b16 %v529, %v525
  %v742 = vpack.c.b16 %v530, %v526
  %v743 = vpack.c.b16 %v531, %v527
  %v744 = vpack.c.b16 %v532, %v528
  %v745 = vpack.c.b16 %v537, %v533
  %v746 = vpack.c.b16 %v538, %v534
  %v747 = vpack.c.b16 %v539, %v535
  %v748 = vpack.c.b16 %v540, %v536
  %v749 = vpack.c.b16 %v545, %v541
  %v750 = vpack.c.b16 %v546, %v542
  %v751 = vpack.c.b16 %v547, %v543
  %v752 = vpack.c.b16 %v548, %v544
  %v753 = vpack.c.b16 %v553, %v549
  %v754 = vpack.c.b16 %v554, %v550
  %v755 = vpack.c.b16 %v555, %v551
  %v756 = vpack.c.b16 %v556, %v552
  %v757 = vpack.c.b16 %v561, %v557
  %v758 = vpack.c.b16 %v562, %v558
  %v759 = vpack.c.b16 %v563, %v559
  %v760 = vpack.c.b16 %v564, %v560
  %v761 = vpack.c.b16 %v569, %v565
  %v762 = vpack.c.b16 %v570, %v566
  %v763 = vpack.c.b16 %v571, %v567
  %v764 = vpack.c.b16 %v572, %v568
  %v765 = vpack.c.b16 %v577, %v573
  %v766 = vpack.c.b16 %v578, %v574
  %v767 = vpack.c.b16 %v579, %v575
  %v768 = vpack.c.b16 %v580, %v576
  %v769 = vpack.c.b16 %v585, %v581
  %v770 = vpack.c.b16 %v586, %v582
  %v771 = vpack.c.b16 %v587, %v583
  %v772 = vpack.c.b16 %v588, %v584
  %v773 = vpack.c.b16 %v593, %v589
  %v774 = vpack.c.b16 %v594, %v590
  %v775 = vpack.c.b16 %v595, %v591
  %v776 = vpack.c.b16 %v596, %v592
  %v777 = vpack.c.b16 %v601, %v597
  %v778 = vpack.c.b16 %v602, %v598
  %v779 = vpack.c.b16 %v603, %v599
  %v780 = vpack.c.b16 %v604, %v600
  %v781 = vpack.c.b16 %v609, %v605
  %v782 = vpack.c.b16 %v610, %v606
  %v783 = vpack.c.b16 %v611, %v607
  %v784 = vpack.c.b16 %v612, %v608
  %v785 = vpack.c.b16 %v617, %v613
  %v786 = vpack.c.b16 %v618, %v614
  %v787 = vpack.c.b16 %v619, %v615
  %v788 = vpack.c.b16 %v620, %v616
  %v789 = vpack.c.b16 %v625, %v621
  %v790 = vpack.c.b16 %v626, %v622
  %v791 = vpack.c.b16 %v627, %v623
  %v792 = vpack.c.b16 %v628, %v624
  %v793 = vpack.c.b16 %v633, %v629
  %v794 = vpack.c.b16 %v634, %v630
  %v795 = vpack.c.b16 %v635, %v631
  %v796 = vpack.c.b16 %v636, %v632
  %v797 = vpack.c.b16 %v641, %v637
  %v798 = vpack.c.b16 %v642, %v638
  %v799 = vpack.c.b16 %v643, %v639
  %v800 = vpack.c.b16 %v644, %v640
  %v801 = vpack.c.b16 %v649, %v645
  %v802 = vpack.c.b16 %v650, %v646
  %v803 = vpack.c.b16 %v651, %v647
  %v804 = vpack.c.b16 %v652, %v648
  %v805 = vpack.c.b16 %v657, %v653
  %v806 = vpack.c.b16 %v658, %v654
  %v807 = vpack.c.b16 %v659, %v655
  %v808 = vpack.c.b16 %v660, %v656
  %v809 = vpack.c.b16 %v665, %v661
  %v810 = vpack.c.b16 %v666, %v662
  %v811 = vpack.c.b16 %v667, %v663
  %v812 = vpack.c.b16 %v668, %v664
  %v813 = vpack.c.b16 %v673, %v669
  %v814 = vpack.c.b16 %v674, %v670
  %v815 = vpack.c.b16 %v675, %v671
  %v816 = vpack.c.b16 %v676, %v672
  %v817 = vpack.c.b16 %v681, %v677
  %v818 = vpack.c.b16 %v682, %v678
  %v819 = vpack.c.b16 %v683, %v679
  %v820 = vpack.c.b16 %v684, %v680
  %v821 = vpack.c.b16 %v689, %v685
  %v822 = vpack.c.b16 %v690, %v686
  %v823 = vpack.c.b16 %v691, %v687
  %v824 = vpack.c.b16 %v692, %v688
  %v825 = vpack.c.b16 %v697, %v693
  %v826 = vpack.c.b16 %v698, %v694
  %v827 = vpack.c.b16 %v699, %v695
  %v828 = vpack.c.b16 %v700, %v696
  %957 = vmatprep.subr.bf16.mxu0 %v730
  %958 = vmatpush1.bf16.msra.mxu0 %v729
  %959 = vmatprep.subr.bf16.mxu0 %v726
  %960 = vmatpush1.bf16.msra.mxu0 %v725
  %961 = vmatprep.subr.bf16.mxu0 %v722
  %962 = vmatpush1.bf16.msra.mxu0 %v721
  %963 = vmatprep.subr.bf16.mxu0 %v718
  %964 = vmatpush1.bf16.msra.mxu0 %v717
  %965 = vmatprep.subr.bf16.mxu0 %v714
  %966 = vmatpush1.bf16.msra.mxu0 %v713
  %967 = vmatprep.subr.bf16.mxu0 %v710
  %968 = vmatpush1.bf16.msra.mxu0 %v709
  %969 = vmatprep.subr.bf16.mxu0 %v706
  %970 = vmatpush1.bf16.msra.mxu0 %v705
  %971 = vmatprep.subr.bf16.mxu0 %v702
  %972 = vmatpush1.bf16.msra.mxu0 %v701
  %973 = vmatprep.subr.bf16.mxu0 %v762
  %974 = vmatpush2.bf16.msra.mxu0 %v761
  %975 = vmatprep.subr.bf16.mxu0 %v758
  %976 = vmatpush2.bf16.msra.mxu0 %v757
  %977 = vmatprep.subr.bf16.mxu0 %v754
  %978 = vmatpush2.bf16.msra.mxu0 %v753
  %979 = vmatprep.subr.bf16.mxu0 %v750
  %980 = vmatpush2.bf16.msra.mxu0 %v749
  %981 = vmatprep.subr.bf16.mxu0 %v746
  %982 = vmatpush2.bf16.msra.mxu0 %v745
  %983 = vmatprep.subr.bf16.mxu0 %v742
  %984 = vmatpush2.bf16.msra.mxu0 %v741
  %985 = vmatprep.subr.bf16.mxu0 %v738
  %986 = vmatpush2.bf16.msra.mxu0 %v737
  %987 = vmatprep.subr.bf16.mxu0 %v734
  %988 = vmatpush2.bf16.msra.mxu0 %v733
  %989 = vmatprep.mubr.bf16.mxu0 %v164
  %990 = vmatmul.mubr.bf16.gmra.mxu0 %v163
  %v991 = vpop.f32.mrf.mxu0
  %v992 = vadd.f32 %v300, %v991
  %v993 = vpop.f32.mrf.mxu0
  %v994 = vadd.f32 %v304, %v993
  %v995 = vpop.f32.mrf.mxu0
  %v996 = vpop.f32.mrf.mxu0
  %997 = vdwg.mxu0
  %998 = vmatprep.subr.bf16.mxu0 %v794
  %999 = vmatpush1.bf16.msra.mxu0 %v793
  %1000 = vmatprep.subr.bf16.mxu0 %v790
  %1001 = vmatpush1.bf16.msra.mxu0 %v789
  %1002 = vmatprep.subr.bf16.mxu0 %v786
  %1003 = vmatpush1.bf16.msra.mxu0 %v785
  %1004 = vmatprep.subr.bf16.mxu0 %v782
  %1005 = vmatpush1.bf16.msra.mxu0 %v781
  %1006 = vmatprep.subr.bf16.mxu0 %v778
  %1007 = vmatpush1.bf16.msra.mxu0 %v777
  %1008 = vmatprep.subr.bf16.mxu0 %v774
  %1009 = vmatpush1.bf16.msra.mxu0 %v773
  %1010 = vmatprep.subr.bf16.mxu0 %v770
  %1011 = vmatpush1.bf16.msra.mxu0 %v769
  %1012 = vmatprep.subr.bf16.mxu0 %v766
  %1013 = vmatpush1.bf16.msra.mxu0 %v765
  %1014 = vmatprep.subr.bf16.mxu0 %v826
  %1015 = vmatpush2.bf16.msra.mxu0 %v825
  %1016 = vmatprep.subr.bf16.mxu0 %v822
  %1017 = vmatpush2.bf16.msra.mxu0 %v821
  %1018 = vmatprep.subr.bf16.mxu0 %v818
  %1019 = vmatpush2.bf16.msra.mxu0 %v817
  %1020 = vmatprep.subr.bf16.mxu0 %v814
  %1021 = vmatpush2.bf16.msra.mxu0 %v813
  %1022 = vmatprep.subr.bf16.mxu0 %v810
  %1023 = vmatpush2.bf16.msra.mxu0 %v809
  %1024 = vmatprep.subr.bf16.mxu0 %v806
  %1025 = vmatpush2.bf16.msra.mxu0 %v805
  %1026 = vmatprep.subr.bf16.mxu0 %v802
  %1027 = vmatpush2.bf16.msra.mxu0 %v801
  %1028 = vmatprep.subr.bf16.mxu0 %v798
  %1029 = vmatpush2.bf16.msra.mxu0 %v797
  %1030 = vmatprep.mubr.bf16.mxu0 %v166
  %1031 = vmatmul.mubr.bf16.gmra.mxu0 %v165
  %v1032 = vpop.f32.mrf.mxu0
  %v1033 = vadd.f32 %v992, %v1032
  %v1034 = vpop.f32.mrf.mxu0
  %v1035 = vadd.f32 %v994, %v1034
  %v1036 = vpop.f32.mrf.mxu0
  %v1037 = vpop.f32.mrf.mxu0
  %1038 = vdwg.mxu0
  %1039 = vmatprep.subr.bf16.mxu0 %v732
  %1040 = vmatpush1.bf16.msra.mxu0 %v731
  %1041 = vmatprep.subr.bf16.mxu0 %v728
  %1042 = vmatpush1.bf16.msra.mxu0 %v727
  %1043 = vmatprep.subr.bf16.mxu0 %v724
  %1044 = vmatpush1.bf16.msra.mxu0 %v723
  %1045 = vmatprep.subr.bf16.mxu0 %v720
  %1046 = vmatpush1.bf16.msra.mxu0 %v719
  %1047 = vmatprep.subr.bf16.mxu0 %v716
  %1048 = vmatpush1.bf16.msra.mxu0 %v715
  %1049 = vmatprep.subr.bf16.mxu0 %v712
  %1050 = vmatpush1.bf16.msra.mxu0 %v711
  %1051 = vmatprep.subr.bf16.mxu0 %v708
  %1052 = vmatpush1.bf16.msra.mxu0 %v707
  %1053 = vmatprep.subr.bf16.mxu0 %v704
  %1054 = vmatpush1.bf16.msra.mxu0 %v703
  %1055 = vmatprep.subr.bf16.mxu0 %v764
  %1056 = vmatpush2.bf16.msra.mxu0 %v763
  %1057 = vmatprep.subr.bf16.mxu0 %v760
  %1058 = vmatpush2.bf16.msra.mxu0 %v759
  %1059 = vmatprep.subr.bf16.mxu0 %v756
  %1060 = vmatpush2.bf16.msra.mxu0 %v755
  %1061 = vmatprep.subr.bf16.mxu0 %v752
  %1062 = vmatpush2.bf16.msra.mxu0 %v751
  %1063 = vmatprep.subr.bf16.mxu0 %v748
  %1064 = vmatpush2.bf16.msra.mxu0 %v747
  %1065 = vmatprep.subr.bf16.mxu0 %v744
  %1066 = vmatpush2.bf16.msra.mxu0 %v743
  %1067 = vmatprep.subr.bf16.mxu0 %v740
  %1068 = vmatpush2.bf16.msra.mxu0 %v739
  %1069 = vmatprep.subr.bf16.mxu0 %v736
  %1070 = vmatpush2.bf16.msra.mxu0 %v735
  %1071 = vmatprep.mubr.bf16.mxu0 %v164
  %1072 = vmatmul.mubr.bf16.gmra.mxu0 %v163
  %v1073 = vpop.f32.mrf.mxu0
  %v1074 = vadd.f32 %v308, %v1073
  %v1075 = vpop.f32.mrf.mxu0
  %v1076 = vadd.f32 %v312, %v1075
  %v1077 = vpop.f32.mrf.mxu0
  %v1078 = vpop.f32.mrf.mxu0
  %1079 = vdwg.mxu0
  %1080 = vmatprep.subr.bf16.mxu0 %v796
  %1081 = vmatpush1.bf16.msra.mxu0 %v795
  %1082 = vmatprep.subr.bf16.mxu0 %v792
  %1083 = vmatpush1.bf16.msra.mxu0 %v791
  %1084 = vmatprep.subr.bf16.mxu0 %v788
  %1085 = vmatpush1.bf16.msra.mxu0 %v787
  %1086 = vmatprep.subr.bf16.mxu0 %v784
  %1087 = vmatpush1.bf16.msra.mxu0 %v783
  %1088 = vmatprep.subr.bf16.mxu0 %v780
  %1089 = vmatpush1.bf16.msra.mxu0 %v779
  %1090 = vmatprep.subr.bf16.mxu0 %v776
  %1091 = vmatpush1.bf16.msra.mxu0 %v775
  %1092 = vmatprep.subr.bf16.mxu0 %v772
  %1093 = vmatpush1.bf16.msra.mxu0 %v771
  %1094 = vmatprep.subr.bf16.mxu0 %v768
  %1095 = vmatpush1.bf16.msra.mxu0 %v767
  %1096 = vmatprep.subr.bf16.mxu0 %v828
  %1097 = vmatpush2.bf16.msra.mxu0 %v827
  %1098 = vmatprep.subr.bf16.mxu0 %v824
  %1099 = vmatpush2.bf16.msra.mxu0 %v823
  %1100 = vmatprep.subr.bf16.mxu0 %v820
  %1101 = vmatpush2.bf16.msra.mxu0 %v819
  %1102 = vmatprep.subr.bf16.mxu0 %v816
  %1103 = vmatpush2.bf16.msra.mxu0 %v815
  %1104 = vmatprep.subr.bf16.mxu0 %v812
  %1105 = vmatpush2.bf16.msra.mxu0 %v811
  %1106 = vmatprep.subr.bf16.mxu0 %v808
  %1107 = vmatpush2.bf16.msra.mxu0 %v807
  %1108 = vmatprep.subr.bf16.mxu0 %v804
  %1109 = vmatpush2.bf16.msra.mxu0 %v803
  %1110 = vmatprep.subr.bf16.mxu0 %v800
  %1111 = vmatpush2.bf16.msra.mxu0 %v799
  %1112 = vmatprep.mubr.bf16.mxu0 %v166
  %1113 = vmatmul.mubr.bf16.gmra.mxu0 %v165
  %v1114 = vpop.f32.mrf.mxu0
  %v1115 = vadd.f32 %v1074, %v1114
  %v1116 = vpop.f32.mrf.mxu0
  %v1117 = vadd.f32 %v1076, %v1116
  %v1118 = vpop.f32.mrf.mxu0
  %v1119 = vpop.f32.mrf.mxu0
  %1120 = vdwg.mxu0
  %v1121 = vmul.f32 %v1033, %v1033
  %v1122 = vmul.f32 %v1035, %v1035
  %v1123 = vmul.f32 %v1115, %v1115
  %v1124 = vmul.f32 %v1117, %v1117
  %vm1125 = vcmask 1045504
  %v1126 = vsel %vm1125, %v1121, 0.0
  %v1127 = vsel %vm1125, %v1122, 0.0
  %v1128 = vadd.f32 %v1126, %v1127
  %v1129 = vsel %vm1125, %v1123, 0.0
  %v1130 = vadd.f32 %v1128, %v1129
  %v1131 = vsel %vm1125, %v1124, 0.0
  %v1132 = vadd.f32 %v1130, %v1131
  %1133 = vadd.xlane.f32.xlu0 %v1132
  %v1134 = vpop.xlane.xlu0 %1133
  %v1135 = vmax.f32 %v1134, 1e-24
  %v1136 = vrsqrt.pop %v1135
  %v1137 = vmul.f32 %v1033, %v1136
  %v1138 = vmul.f32 %v1035, %v1136
  %v1139 = vmul.f32 %v1115, %v1136
  %v1140 = vmul.f32 %v1117, %v1136
  %1141 = vst [vmem:[%s5] sm:$0x3f] %v1137
  %1142 = vst [vmem:[%s5 + $0x8] sm:$0x3f] %v1138
  %1143 = vst [vmem:[%s5 + $0x10] sm:$0x3f] %v1139
  %1144 = vst [vmem:[%s5 + $0x18] sm:$0x3f] %v1140
  // Predicated region
  $region22: #{align_forward.4} parent=0 // pred_check
    _
  $region23: #{align_forward.4} parent=0 // pred_check_branch
    %1146 = sbr.rel (0) target = $region25
  $region24: #{align_forward.4} parent=0 // pred_region
    _
  $region25: #{align_forward.4} parent=0 // pred_fallthru
    _
  // Predicated region
  $region26: #{align_forward.4} parent=0 // pred_check
    _
  $region27: #{align_forward.4} parent=0 // pred_check_branch
    %1148 = sbr.rel (0) target = $region29
  $region28: #{align_forward.4} parent=0 // pred_region
    _
  $region29: #{align_forward.4} parent=0 // pred_fallthru
    _

</llo_original>
